<compile_context>
chip_gen: v5e
topology: v5e:2x2
jax: 0.10.0
libtpu: 0.0.40
codegen_flags: <defaults>
</compile_context>

<pallas_src>
import functools

import jax
import jax.numpy as jnp
from jax.experimental import pallas as pl
from jax.experimental.pallas import tpu as pltpu


def _round_up(v, m):
    return ((v + m - 1) // m) * m


# ----------------------------- kernels ---------------------------------------


def sage_layer_kernel(a_ref, xk_ref, xi_ref, w_ref, b_ref, out_ref, acc_ref,
                      *, apply_relu):
    """One SAGEConv layer.

    a_ref  : [TM, TK] bf16   mean-aggregation block A[i, k]
    xk_ref : [TK, F]  bf16   source-node features (reduction operand)
    xi_ref : [TM, F]  bf16   self features of this row tile
    w_ref  : [2F, H]  bf16   fused [W_l; W_r]
    b_ref  : [1,  H]  f32    lin_l bias
    out_ref: [TM, H]         layer output (bf16)
    acc_ref: [TM, F]  f32    VMEM accumulator for A @ x
    """
    k = pl.program_id(1)

    @pl.when(k == 0)
    def _():
        acc_ref[...] = jnp.zeros_like(acc_ref)

    acc_ref[...] += jnp.dot(a_ref[...], xk_ref[...],
                            preferred_element_type=jnp.float32)

    @pl.when(k == pl.num_programs(1) - 1)
    def _():
        fused = jnp.concatenate(
            [acc_ref[...].astype(jnp.bfloat16), xi_ref[...]], axis=1)
        h = jnp.dot(fused, w_ref[...],
                    preferred_element_type=jnp.float32) + b_ref[...]
        if apply_relu:
            h = jnp.maximum(h, 0.0)
        out_ref[...] = h.astype(out_ref.dtype)


def sage_cls_kernel(a_ref, hk_ref, hi_ref, w_ref, b_ref, wc_ref, bc_ref,
                    emb_ref, logits_ref, acc_ref):
    """Second SAGEConv layer fused with the linear classifier."""
    k = pl.program_id(1)

    @pl.when(k == 0)
    def _():
        acc_ref[...] = jnp.zeros_like(acc_ref)

    acc_ref[...] += jnp.dot(a_ref[...], hk_ref[...],
                            preferred_element_type=jnp.float32)

    @pl.when(k == pl.num_programs(1) - 1)
    def _():
        fused = jnp.concatenate(
            [acc_ref[...].astype(jnp.bfloat16), hi_ref[...]], axis=1)
        h2 = jnp.dot(fused, w_ref[...],
                     preferred_element_type=jnp.float32) + b_ref[...]
        emb_ref[...] = h2
        logits_ref[...] = (
            jnp.dot(h2.astype(jnp.bfloat16), wc_ref[...],
                    preferred_element_type=jnp.float32) + bc_ref[...])


# ----------------------------- wrapper ----------------------------------------


def graphsage_forward(x, edge_index, params):
    """x: [N, Fin] f32, edge_index: [2, E] int32 (row 0 = src, row 1 = dst)."""
    N, Fin = x.shape
    H = params["w2l"].shape[1]
    C = params["wc"].shape[1]

    # Lane-dense padded dims (multiples of 128).
    F_p = _round_up(max(Fin, 128), 128)
    H_p = _round_up(max(H, 128), 128)
    C_p = _round_up(max(C, 128), 128)

    # Row / reduction tile sizes (bigger tiles once N is large enough).
    tile = 512 if N >= 512 else 128
    N_p = _round_up(N, tile)
    TM = TK = tile
    grid = (N_p // TM, N_p // TK)

    # --- glue: dense mean-aggregation matrix A[dst, src] = 1/in_deg(dst) -------
    src = edge_index[0]
    dst = edge_index[1]
    adj = jnp.zeros((N_p, N_p), jnp.float32).at[dst, src].add(1.0)
    deg = jnp.sum(adj, axis=1, keepdims=True)
    a = (adj / jnp.maximum(deg, 1.0)).astype(jnp.bfloat16)

    # --- padded inputs / fused padded weights (bf16 for MXU operands) ---------
    def pad_bf16(w, rows, cols):
        out = jnp.zeros((rows, cols), jnp.bfloat16)
        return out.at[:w.shape[0], :w.shape[1]].set(w.astype(jnp.bfloat16))

    x_p = pad_bf16(x, N_p, F_p)
    w1 = jnp.concatenate([pad_bf16(params["w1l"], F_p, H_p),
                          pad_bf16(params["w1r"], F_p, H_p)], axis=0)  # [2F_p,H_p]
    w2 = jnp.concatenate([pad_bf16(params["w2l"], H_p, H_p),
                          pad_bf16(params["w2r"], H_p, H_p)], axis=0)  # [2H_p,H_p]
    wc = pad_bf16(params["wc"], H_p, C_p)
    b1 = jnp.zeros((1, H_p), jnp.float32).at[:, :H].set(params["b1"])
    b2 = jnp.zeros((1, H_p), jnp.float32).at[:, :H].set(params["b2"])
    bc = jnp.zeros((1, C_p), jnp.float32).at[:, :C].set(params["bc"])

    cparams = pltpu.CompilerParams(
        dimension_semantics=("parallel", "arbitrary"),
        vmem_limit_bytes=32 * 1024 * 1024,   # fits v5e/v6e/v7x with headroom
    )

    # --- layer 1: h1 = relu(SAGEConv1(x, A)) ----------------------------------
    h1 = pl.pallas_call(
        functools.partial(sage_layer_kernel, apply_relu=True),
        out_shape=jax.ShapeDtypeStruct((N_p, H_p), jnp.bfloat16),
        grid_spec=pltpu.PrefetchScalarGridSpec(
            num_scalar_prefetch=0,
            grid=grid,
            in_specs=[
                pl.BlockSpec((TM, TK), lambda i, k: (i, k)),        # A block
                pl.BlockSpec((TK, F_p), lambda i, k: (k, 0)),       # x (neighbors)
                pl.BlockSpec((TM, F_p), lambda i, k: (i, 0)),       # x (self)
                pl.BlockSpec((2 * F_p, H_p), lambda i, k: (0, 0)),  # [W1l;W1r]
                pl.BlockSpec((1, H_p), lambda i, k: (0, 0)),        # b1
            ],
            out_specs=pl.BlockSpec((TM, H_p), lambda i, k: (i, 0)),
            scratch_shapes=[pltpu.VMEM((TM, F_p), jnp.float32)],
        ),
        compiler_params=cparams,
    )(a, x_p, x_p, w1, b1)

    # --- layer 2 + classifier --------------------------------------------------
    emb_p, logits_p = pl.pallas_call(
        sage_cls_kernel,
        out_shape=(
            jax.ShapeDtypeStruct((N_p, H_p), jnp.float32),   # embedding
            jax.ShapeDtypeStruct((N_p, C_p), jnp.float32),   # logits
        ),
        grid_spec=pltpu.PrefetchScalarGridSpec(
            num_scalar_prefetch=0,
            grid=grid,
            in_specs=[
                pl.BlockSpec((TM, TK), lambda i, k: (i, k)),        # A block
                pl.BlockSpec((TK, H_p), lambda i, k: (k, 0)),       # h1 (neighbors)
                pl.BlockSpec((TM, H_p), lambda i, k: (i, 0)),       # h1 (self)
                pl.BlockSpec((2 * H_p, H_p), lambda i, k: (0, 0)),  # [W2l;W2r]
                pl.BlockSpec((1, H_p), lambda i, k: (0, 0)),        # b2
                pl.BlockSpec((H_p, C_p), lambda i, k: (0, 0)),      # Wc
                pl.BlockSpec((1, C_p), lambda i, k: (0, 0)),        # bc
            ],
            out_specs=(
                pl.BlockSpec((TM, H_p), lambda i, k: (i, 0)),
                pl.BlockSpec((TM, C_p), lambda i, k: (i, 0)),
            ),
            scratch_shapes=[pltpu.VMEM((TM, H_p), jnp.float32)],
        ),
        compiler_params=cparams,
    )(a, h1, h1, w2, b2, wc, bc)

    # --- slice padding, cheap softmax/argmax on [N, C] in XLA ------------------
    emb = emb_p[:N, :H]
    logits = logits_p[:N, :C]
    soft = jax.nn.softmax(logits, axis=1)
    hard = jnp.argmax(logits, axis=1).astype(jnp.int32)

    return logits, {"embedding": emb, "soft_label": soft, "hard_label": hard}


# ----------------------------- params / reference -----------------------------


def init_params(key, in_feats, hidden_dim, out_feats):
    ks = jax.random.split(key, 5)

    def lin(k, fan_in, fan_out):
        bound = 1.0 / jnp.sqrt(fan_in)
        return jax.random.uniform(k, (fan_in, fan_out), jnp.float32, -bound, bound)

    return {
        "w1l": lin(ks[0], in_feats, hidden_dim),
        "b1": jnp.zeros((1, hidden_dim), jnp.float32),
        "w1r": lin(ks[1], in_feats, hidden_dim),
        "w2l": lin(ks[2], hidden_dim, hidden_dim),
        "b2": jnp.zeros((1, hidden_dim), jnp.float32),
        "w2r": lin(ks[3], hidden_dim, hidden_dim),
        "wc": lin(ks[4], hidden_dim, out_feats),
        "bc": jnp.zeros((1, out_feats), jnp.float32),
    }


def _reference_logits(x, edge_index, params):
    """Pure-JAX f32 reference (same math, no tiling / no bf16)."""
    N = x.shape[0]
    src, dst = edge_index[0], edge_index[1]
    adj = jnp.zeros((N, N), jnp.float32).at[dst, src].add(1.0)
    a = adj / jnp.maximum(jnp.sum(adj, axis=1, keepdims=True), 1.0)
    h1 = jnp.maximum(a @ x @ params["w1l"] + params["b1"] + x @ params["w1r"], 0.0)
    h2 = a @ h1 @ params["w2l"] + params["b2"] + h1 @ params["w2r"]
    return h2 @ params["wc"] + params["bc"]


# ----------------------------- demo --------------------------------------------

if __name__ == "__main__":
    N, E = 16, 48
    in_feats, hidden_dim, out_feats = 8, 32, 4

    key = jax.random.PRNGKey(0)
    kx, ke_src, ke_dst, kp = jax.random.split(key, 4)

    x = jax.random.normal(kx, (N, in_feats), jnp.float32)
    edge_index = jnp.stack([
        jax.random.randint(ke_src, (E,), 0, N, dtype=jnp.int32),
        jax.random.randint(ke_dst, (E,), 0, N, dtype=jnp.int32),
    ], axis=0)

    params = init_params(kp, in_feats, hidden_dim, out_feats)

    logits, aux = jax.jit(graphsage_forward)(x, edge_index, params)
    jax.block_until_ready((logits, aux))

    assert logits.shape == (N, out_feats)
    assert aux["embedding"].shape == (N, hidden_dim)
    assert aux["soft_label"].shape == (N, out_feats)
    assert aux["hard_label"].shape == (N,)
    assert bool(jnp.all(jnp.isfinite(logits)))

    # Loose sanity check vs f32 reference (kernel uses bf16 MXU operands).
    ref = _reference_logits(x, edge_index, params)
    max_abs_err = float(jnp.max(jnp.abs(logits - ref)))
    assert max_abs_err < 0.3, f"max abs err too large: {max_abs_err}"

    print("KERNEL_OK")
</pallas_src>

<mosaic_0001>
module attributes {stable_mosaic.version = 11 : i64} {
  func.func @sage_layer_kernel(%arg0: i32, %arg1: i32, %arg2: memref<128x128xbf16, #tpu.memory_space<vmem>>, %arg3: memref<128x128xbf16, #tpu.memory_space<vmem>>, %arg4: memref<128x128xbf16, #tpu.memory_space<vmem>>, %arg5: memref<256x128xbf16, #tpu.memory_space<vmem>>, %arg6: memref<1x128xf32, #tpu.memory_space<vmem>>, %arg7: memref<128x128xbf16, #tpu.memory_space<vmem>>, %arg8: memref<128x128xf32, #tpu.memory_space<vmem>>) attributes {dimension_semantics = [#tpu.dimension_semantics<parallel>, #tpu.dimension_semantics<arbitrary>], iteration_bounds = array<i64: 1, 1>, scalar_prefetch = 0 : i64, scratch_operands = 1 : i64, tpu.core_type = #tpu.core_type<tc>, window_params = [{transform_indices = @transform_0, window_bounds = array<i64: 128, 128>}, {transform_indices = @transform_1, window_bounds = array<i64: 128, 128>}, {transform_indices = @transform_2, window_bounds = array<i64: 128, 128>}, {pipeline_mode = #tpu.pipeline_mode<synchronous>, transform_indices = @transform_3, window_bounds = array<i64: 256, 128>}, {pipeline_mode = #tpu.pipeline_mode<synchronous>, transform_indices = @transform_4, window_bounds = array<i64: 1, 128>}, {transform_indices = @transform_5, window_bounds = array<i64: 128, 128>}]} {
    %c0_i32 = arith.constant 0 : i32
    %0 = arith.cmpi eq, %arg1, %c0_i32 : i32
    %1 = arith.extui %0 : i1 to i32
    %c0_i32_0 = arith.constant 0 : i32
    %2 = arith.cmpi ne, %1, %c0_i32_0 : i32
    scf.if %2 {
      %cst_10 = arith.constant 0.000000e+00 : f32
      %12 = vector.broadcast %cst_10 : f32 to vector<128x128xf32>
      %c0_11 = arith.constant 0 : index
      %c0_12 = arith.constant 0 : index
      %13 = vector.load %arg8[%c0_11, %c0_12] : memref<128x128xf32, #tpu.memory_space<vmem>>, vector<128x128xf32>
      tpu.vector_store %arg8[%c0_11, %c0_12], %12 {strides = array<i32>} : memref<128x128xf32, #tpu.memory_space<vmem>>, vector<128x128xf32>,
    } else {
    }
    %c0 = arith.constant 0 : index
    %c0_1 = arith.constant 0 : index
    %3 = vector.load %arg8[%c0, %c0_1] : memref<128x128xf32, #tpu.memory_space<vmem>>, vector<128x128xf32>
    %c0_2 = arith.constant 0 : index
    %c0_3 = arith.constant 0 : index
    %4 = vector.load %arg2[%c0_2, %c0_3] : memref<128x128xbf16, #tpu.memory_space<vmem>>, vector<128x128xbf16>
    %c0_4 = arith.constant 0 : index
    %c0_5 = arith.constant 0 : index
    %5 = vector.load %arg3[%c0_4, %c0_5] : memref<128x128xbf16, #tpu.memory_space<vmem>>, vector<128x128xbf16>
    %cst = arith.constant dense<0.000000e+00> : vector<128x128xf32>
    %6 = tpu.matmul %4, %5, %cst {dimension_numbers = #tpu.dot_dimension_numbers<[1], [0], [0], [1], [0, 0, 1, 1], [], []>} : vector<128x128xbf16>, vector<128x128xbf16>, vector<128x128xf32> -> vector<128x128xf32>
    %7 = arith.addf %3, %6 : vector<128x128xf32>
    %c0_6 = arith.constant 0 : index
    %c0_7 = arith.constant 0 : index
    %8 = vector.load %arg8[%c0_6, %c0_7] : memref<128x128xf32, #tpu.memory_space<vmem>>, vector<128x128xf32>
    tpu.vector_store %arg8[%c0_6, %c0_7], %7 {strides = array<i32>} : memref<128x128xf32, #tpu.memory_space<vmem>>, vector<128x128xf32>,
    %c0_i32_8 = arith.constant 0 : i32
    %9 = arith.cmpi eq, %arg1, %c0_i32_8 : i32
    %10 = arith.extui %9 : i1 to i32
    %c0_i32_9 = arith.constant 0 : i32
    %11 = arith.cmpi ne, %10, %c0_i32_9 : i32
    scf.if %11 {
      %c0_10 = arith.constant 0 : index
      %c0_11 = arith.constant 0 : index
      %12 = vector.load %arg8[%c0_10, %c0_11] : memref<128x128xf32, #tpu.memory_space<vmem>>, vector<128x128xf32>
      %13 = arith.truncf %12 : vector<128x128xf32> to vector<128x128xbf16>
      %c0_12 = arith.constant 0 : index
      %c0_13 = arith.constant 0 : index
      %14 = vector.load %arg4[%c0_12, %c0_13] : memref<128x128xbf16, #tpu.memory_space<vmem>>, vector<128x128xbf16>
      %15 = tpu.concatenate %13, %14 in 1 : vector<128x128xbf16>, vector<128x128xbf16> -> vector<128x256xbf16>
      %c0_14 = arith.constant 0 : index
      %c0_15 = arith.constant 0 : index
      %16 = vector.load %arg5[%c0_14, %c0_15] : memref<256x128xbf16, #tpu.memory_space<vmem>>, vector<256x128xbf16>
      %cst_16 = arith.constant dense<0.000000e+00> : vector<128x128xf32>
      %17 = tpu.matmul %15, %16, %cst_16 {dimension_numbers = #tpu.dot_dimension_numbers<[1], [0], [0], [1], [0, 0, 1, 1], [], []>} : vector<128x256xbf16>, vector<256x128xbf16>, vector<128x128xf32> -> vector<128x128xf32>
      %c0_17 = arith.constant 0 : index
      %c0_18 = arith.constant 0 : index
      %18 = vector.load %arg6[%c0_17, %c0_18] : memref<1x128xf32, #tpu.memory_space<vmem>>, vector<1x128xf32>
      %19 = vector.broadcast %18 : vector<1x128xf32> to vector<128x128xf32>
      %20 = arith.addf %17, %19 : vector<128x128xf32>
      %cst_19 = arith.constant 0.000000e+00 : f32
      %21 = vector.broadcast %cst_19 : f32 to vector<128x128xf32>
      %22 = arith.maximumf %20, %21 : vector<128x128xf32>
      %23 = arith.truncf %22 : vector<128x128xf32> to vector<128x128xbf16>
      %c0_20 = arith.constant 0 : index
      %c0_21 = arith.constant 0 : index
      %24 = vector.load %arg7[%c0_20, %c0_21] : memref<128x128xbf16, #tpu.memory_space<vmem>>, vector<128x128xbf16>
      tpu.vector_store %arg7[%c0_20, %c0_21], %23 {strides = array<i32>} : memref<128x128xbf16, #tpu.memory_space<vmem>>, vector<128x128xbf16>,
    } else {
    }
    return
  }
  func.func @transform_0(%arg0: i32, %arg1: i32) -> (i32, i32) {
    %c0_i32 = arith.constant 0 : i32
    return %arg0, %arg1 : i32, i32
  }
  func.func @transform_1(%arg0: i32, %arg1: i32) -> (i32, i32) {
    %c0_i32 = arith.constant 0 : i32
    %c0_i32_0 = arith.constant 0 : i32
    return %arg1, %c0_i32 : i32, i32
  }
  func.func @transform_2(%arg0: i32, %arg1: i32) -> (i32, i32) {
    %c0_i32 = arith.constant 0 : i32
    %c0_i32_0 = arith.constant 0 : i32
    return %arg0, %c0_i32 : i32, i32
  }
  func.func @transform_3(%arg0: i32, %arg1: i32) -> (i32, i32) {
    %c0_i32 = arith.constant 0 : i32
    %c0_i32_0 = arith.constant 0 : i32
    %c0_i32_1 = arith.constant 0 : i32
    return %c0_i32, %c0_i32_0 : i32, i32
  }
  func.func @transform_4(%arg0: i32, %arg1: i32) -> (i32, i32) {
    %c0_i32 = arith.constant 0 : i32
    %c0_i32_0 = arith.constant 0 : i32
    %c0_i32_1 = arith.constant 0 : i32
    return %c0_i32, %c0_i32_0 : i32, i32
  }
  func.func @transform_5(%arg0: i32, %arg1: i32) -> (i32, i32) {
    %c0_i32 = arith.constant 0 : i32
    %c0_i32_0 = arith.constant 0 : i32
    return %arg0, %c0_i32 : i32, i32
  }
}

module attributes {stable_mosaic.version = 11 : i64} {
  func.func @sage_cls_kernel(%arg0: i32, %arg1: i32, %arg2: memref<128x128xbf16, #tpu.memory_space<vmem>>, %arg3: memref<128x128xbf16, #tpu.memory_space<vmem>>, %arg4: memref<128x128xbf16, #tpu.memory_space<vmem>>, %arg5: memref<256x128xbf16, #tpu.memory_space<vmem>>, %arg6: memref<1x128xf32, #tpu.memory_space<vmem>>, %arg7: memref<128x128xbf16, #tpu.memory_space<vmem>>, %arg8: memref<1x128xf32, #tpu.memory_space<vmem>>, %arg9: memref<128x128xf32, #tpu.memory_space<vmem>>, %arg10: memref<128x128xf32, #tpu.memory_space<vmem>>, %arg11: memref<128x128xf32, #tpu.memory_space<vmem>>) attributes {dimension_semantics = [#tpu.dimension_semantics<parallel>, #tpu.dimension_semantics<arbitrary>], iteration_bounds = array<i64: 1, 1>, scalar_prefetch = 0 : i64, scratch_operands = 1 : i64, tpu.core_type = #tpu.core_type<tc>, window_params = [{transform_indices = @transform_0, window_bounds = array<i64: 128, 128>}, {transform_indices = @transform_1, window_bounds = array<i64: 128, 128>}, {transform_indices = @transform_2, window_bounds = array<i64: 128, 128>}, {pipeline_mode = #tpu.pipeline_mode<synchronous>, transform_indices = @transform_3, window_bounds = array<i64: 256, 128>}, {pipeline_mode = #tpu.pipeline_mode<synchronous>, transform_indices = @transform_4, window_bounds = array<i64: 1, 128>}, {pipeline_mode = #tpu.pipeline_mode<synchronous>, transform_indices = @transform_5, window_bounds = array<i64: 128, 128>}, {pipeline_mode = #tpu.pipeline_mode<synchronous>, transform_indices = @transform_6, window_bounds = array<i64: 1, 128>}, {transform_indices = @transform_7, window_bounds = array<i64: 128, 128>}, {transform_indices = @transform_8, window_bounds = array<i64: 128, 128>}]} {
    %c0_i32 = arith.constant 0 : i32
    %0 = arith.cmpi eq, %arg1, %c0_i32 : i32
    %1 = arith.extui %0 : i1 to i32
    %c0_i32_0 = arith.constant 0 : i32
    %2 = arith.cmpi ne, %1, %c0_i32_0 : i32
    scf.if %2 {
      %cst_10 = arith.constant 0.000000e+00 : f32
      %12 = vector.broadcast %cst_10 : f32 to vector<128x128xf32>
      %c0_11 = arith.constant 0 : index
      %c0_12 = arith.constant 0 : index
      %13 = vector.load %arg11[%c0_11, %c0_12] : memref<128x128xf32, #tpu.memory_space<vmem>>, vector<128x128xf32>
      tpu.vector_store %arg11[%c0_11, %c0_12], %12 {strides = array<i32>} : memref<128x128xf32, #tpu.memory_space<vmem>>, vector<128x128xf32>,
    } else {
    }
    %c0 = arith.constant 0 : index
    %c0_1 = arith.constant 0 : index
    %3 = vector.load %arg11[%c0, %c0_1] : memref<128x128xf32, #tpu.memory_space<vmem>>, vector<128x128xf32>
    %c0_2 = arith.constant 0 : index
    %c0_3 = arith.constant 0 : index
    %4 = vector.load %arg2[%c0_2, %c0_3] : memref<128x128xbf16, #tpu.memory_space<vmem>>, vector<128x128xbf16>
    %c0_4 = arith.constant 0 : index
    %c0_5 = arith.constant 0 : index
    %5 = vector.load %arg3[%c0_4, %c0_5] : memref<128x128xbf16, #tpu.memory_space<vmem>>, vector<128x128xbf16>
    %cst = arith.constant dense<0.000000e+00> : vector<128x128xf32>
    %6 = tpu.matmul %4, %5, %cst {dimension_numbers = #tpu.dot_dimension_numbers<[1], [0], [0], [1], [0, 0, 1, 1], [], []>} : vector<128x128xbf16>, vector<128x128xbf16>, vector<128x128xf32> -> vector<128x128xf32>
    %7 = arith.addf %3, %6 : vector<128x128xf32>
    %c0_6 = arith.constant 0 : index
    %c0_7 = arith.constant 0 : index
    %8 = vector.load %arg11[%c0_6, %c0_7] : memref<128x128xf32, #tpu.memory_space<vmem>>, vector<128x128xf32>
    tpu.vector_store %arg11[%c0_6, %c0_7], %7 {strides = array<i32>} : memref<128x128xf32, #tpu.memory_space<vmem>>, vector<128x128xf32>,
    %c0_i32_8 = arith.constant 0 : i32
    %9 = arith.cmpi eq, %arg1, %c0_i32_8 : i32
    %10 = arith.extui %9 : i1 to i32
    %c0_i32_9 = arith.constant 0 : i32
    %11 = arith.cmpi ne, %10, %c0_i32_9 : i32
    scf.if %11 {
      %c0_10 = arith.constant 0 : index
      %c0_11 = arith.constant 0 : index
      %12 = vector.load %arg11[%c0_10, %c0_11] : memref<128x128xf32, #tpu.memory_space<vmem>>, vector<128x128xf32>
      %13 = arith.truncf %12 : vector<128x128xf32> to vector<128x128xbf16>
      %c0_12 = arith.constant 0 : index
      %c0_13 = arith.constant 0 : index
      %14 = vector.load %arg4[%c0_12, %c0_13] : memref<128x128xbf16, #tpu.memory_space<vmem>>, vector<128x128xbf16>
      %15 = tpu.concatenate %13, %14 in 1 : vector<128x128xbf16>, vector<128x128xbf16> -> vector<128x256xbf16>
      %c0_14 = arith.constant 0 : index
      %c0_15 = arith.constant 0 : index
      %16 = vector.load %arg5[%c0_14, %c0_15] : memref<256x128xbf16, #tpu.memory_space<vmem>>, vector<256x128xbf16>
      %cst_16 = arith.constant dense<0.000000e+00> : vector<128x128xf32>
      %17 = tpu.matmul %15, %16, %cst_16 {dimension_numbers = #tpu.dot_dimension_numbers<[1], [0], [0], [1], [0, 0, 1, 1], [], []>} : vector<128x256xbf16>, vector<256x128xbf16>, vector<128x128xf32> -> vector<128x128xf32>
      %c0_17 = arith.constant 0 : index
      %c0_18 = arith.constant 0 : index
      %18 = vector.load %arg6[%c0_17, %c0_18] : memref<1x128xf32, #tpu.memory_space<vmem>>, vector<1x128xf32>
      %19 = vector.broadcast %18 : vector<1x128xf32> to vector<128x128xf32>
      %20 = arith.addf %17, %19 : vector<128x128xf32>
      %c0_19 = arith.constant 0 : index
      %c0_20 = arith.constant 0 : index
      %21 = vector.load %arg9[%c0_19, %c0_20] : memref<128x128xf32, #tpu.memory_space<vmem>>, vector<128x128xf32>
      tpu.vector_store %arg9[%c0_19, %c0_20], %20 {strides = array<i32>} : memref<128x128xf32, #tpu.memory_space<vmem>>, vector<128x128xf32>,
      %22 = arith.truncf %20 : vector<128x128xf32> to vector<128x128xbf16>
      %c0_21 = arith.constant 0 : index
      %c0_22 = arith.constant 0 : index
      %23 = vector.load %arg7[%c0_21, %c0_22] : memref<128x128xbf16, #tpu.memory_space<vmem>>, vector<128x128xbf16>
      %cst_23 = arith.constant dense<0.000000e+00> : vector<128x128xf32>
      %24 = tpu.matmul %22, %23, %cst_23 {dimension_numbers = #tpu.dot_dimension_numbers<[1], [0], [0], [1], [0, 0, 1, 1], [], []>} : vector<128x128xbf16>, vector<128x128xbf16>, vector<128x128xf32> -> vector<128x128xf32>
      %c0_24 = arith.constant 0 : index
      %c0_25 = arith.constant 0 : index
      %25 = vector.load %arg8[%c0_24, %c0_25] : memref<1x128xf32, #tpu.memory_space<vmem>>, vector<1x128xf32>
      %26 = vector.broadcast %25 : vector<1x128xf32> to vector<128x128xf32>
      %27 = arith.addf %24, %26 : vector<128x128xf32>
      %c0_26 = arith.constant 0 : index
      %c0_27 = arith.constant 0 : index
      %28 = vector.load %arg10[%c0_26, %c0_27] : memref<128x128xf32, #tpu.memory_space<vmem>>, vector<128x128xf32>
      tpu.vector_store %arg10[%c0_26, %c0_27], %27 {strides = array<i32>} : memref<128x128xf32, #tpu.memory_space<vmem>>, vector<128x128xf32>,
    } else {
    }
    return
  }
  func.func @transform_0(%arg0: i32, %arg1: i32) -> (i32, i32) {
    %c0_i32 = arith.constant 0 : i32
    return %arg0, %arg1 : i32, i32
  }
  func.func @transform_1(%arg0: i32, %arg1: i32) -> (i32, i32) {
    %c0_i32 = arith.constant 0 : i32
    %c0_i32_0 = arith.constant 0 : i32
    return %arg1, %c0_i32 : i32, i32
  }
  func.func @transform_2(%arg0: i32, %arg1: i32) -> (i32, i32) {
    %c0_i32 = arith.constant 0 : i32
    %c0_i32_0 = arith.constant 0 : i32
    return %arg0, %c0_i32 : i32, i32
  }
  func.func @transform_3(%arg0: i32, %arg1: i32) -> (i32, i32) {
    %c0_i32 = arith.constant 0 : i32
    %c0_i32_0 = arith.constant 0 : i32
    %c0_i32_1 = arith.constant 0 : i32
    return %c0_i32, %c0_i32_0 : i32, i32
  }
  func.func @transform_4(%arg0: i32, %arg1: i32) -> (i32, i32) {
    %c0_i32 = arith.constant 0 : i32
    %c0_i32_0 = arith.constant 0 : i32
    %c0_i32_1 = arith.constant 0 : i32
    return %c0_i32, %c0_i32_0 : i32, i32
  }
  func.func @transform_5(%arg0: i32, %arg1: i32) -> (i32, i32) {
    %c0_i32 = arith.constant 0 : i32
    %c0_i32_0 = arith.constant 0 : i32
    %c0_i32_1 = arith.constant 0 : i32
    return %c0_i32, %c0_i32_0 : i32, i32
  }
  func.func @transform_6(%arg0: i32, %arg1: i32) -> (i32, i32) {
    %c0_i32 = arith.constant 0 : i32
    %c0_i32_0 = arith.constant 0 : i32
    %c0_i32_1 = arith.constant 0 : i32
    return %c0_i32, %c0_i32_0 : i32, i32
  }
  func.func @transform_7(%arg0: i32, %arg1: i32) -> (i32, i32) {
    %c0_i32 = arith.constant 0 : i32
    %c0_i32_0 = arith.constant 0 : i32
    return %arg0, %c0_i32 : i32, i32
  }
  func.func @transform_8(%arg0: i32, %arg1: i32) -> (i32, i32) {
    %c0_i32 = arith.constant 0 : i32
    %c0_i32_0 = arith.constant 0 : i32
    return %arg0, %c0_i32 : i32, i32
  }
}

</mosaic_0001>

<llo_original>
// kernel: graphsage_forward.2
$region0: #{graphsage_forward.2}
  #allocation0 [shape = 'u32[]', space=smem, size = 0x4, offset = 0x4, fixed_abs, tag = 'smem constant byte address 0x4 - core index']
  #allocation1 [shape = 'u32[72,128]{1,0:T(1,128)}', space=vmem, size = 0x9000, scoped, tag = 'internal scratch']
  #allocation2 [shape = 'f32[128,128]{1,0:T(8,128)}', space=vmem, size = 0x10000, scoped, tag = 'scratch operand']
  %s0 = inlined_call_operand.vmem [shape: bf16[128,128], index: 0, kind: input, shape index: {}]
  %s1 = inlined_call_operand.vmem [shape: bf16[128,128], index: 1, kind: input, shape index: {}, may-alias: {1,2}]
  %s2 = inlined_call_operand.vmem [shape: bf16[128,128], index: 2, kind: input, shape index: {}, may-alias: {1,2}]
  %s3 = inlined_call_operand.vmem [shape: bf16[256,128], index: 3, kind: input, shape index: {}]
  %s4 = inlined_call_operand.vmem [shape: f32[1,128], index: 4, kind: input, shape index: {}]
  %s5 = inlined_call_operand.vmem [shape: bf16[128,128], index: 5, kind: output, shape index: {}]
  %s6 = sld [smem:[#allocation0]]
  $region38: #{graphsage_forward.2} parent=0
    _
  %s8 = ssub.s32 1, %s6
  %s9 = scalar_select 0, %s8, %s6
  // Predicated region
  $region2: #{graphsage_forward.2} parent=0 // pred_check
    _
  $region3: #{graphsage_forward.2} parent=0 // pred_check_branch
    %11 = sbr.rel (0) target = $region5
  $region4: #{graphsage_forward.2} parent=0 // pred_region
    _
  $region5: #{graphsage_forward.2} parent=0 // pred_fallthru
    _
  // Predicated region
  $region6: #{graphsage_forward.2} parent=0 // pred_check
    _
  $region7: #{graphsage_forward.2} parent=0 // pred_check_branch
    %13 = sbr.rel (0) target = $region9
  $region8: #{graphsage_forward.2} parent=0 // pred_region
    _
  $region9: #{graphsage_forward.2} parent=0 // pred_fallthru
    _
  // Predicated region
  $region10: #{graphsage_forward.2} parent=0 // pred_check
    _
  $region11: #{graphsage_forward.2} parent=0 // pred_check_branch
    %15 = sbr.rel (0) target = $region13
  $region12: #{graphsage_forward.2} parent=0 // pred_region
    _
  $region13: #{graphsage_forward.2} parent=0 // pred_fallthru
    _
  // Predicated region
  $region14: #{graphsage_forward.2} parent=0 // pred_check
    _
  $region15: #{graphsage_forward.2} parent=0 // pred_check_branch
    %17 = sbr.rel (0) target = $region17
  $region16: #{graphsage_forward.2} parent=0 // pred_region
    _
  $region17: #{graphsage_forward.2} parent=0 // pred_fallthru
    _
  // Predicated region
  $region18: #{graphsage_forward.2} parent=0 // pred_check
    _
  $region19: #{graphsage_forward.2} parent=0 // pred_check_branch
    %19 = sbr.rel (0) target = $region21
  $region20: #{graphsage_forward.2} parent=0 // pred_region
    _
  $region21: #{graphsage_forward.2} parent=0 // pred_fallthru
    _
  %p20 = scmp.eq.s32.totalorder 0, 0
  // Predicated region
  $region22: #{graphsage_forward.2} parent=0 // pred_check
    %p21 = pneg %p20
  $region23: #{graphsage_forward.2} parent=0 // pred_check_branch
    %23 = sbr.rel (%p21) target = $region25
  $region24: #{graphsage_forward.2} parent=0 // pred_region
    %24 = vst [vmem:[#allocation2] sm:$0xff] 0.0
    %25 = vst [vmem:[#allocation2 + $0x8] sm:$0xff] 0.0
    %26 = vst [vmem:[#allocation2 + $0x10] sm:$0xff] 0.0
    %27 = vst [vmem:[#allocation2 + $0x18] sm:$0xff] 0.0
    %28 = vst [vmem:[#allocation2 + $0x20] sm:$0xff] 0.0
    %29 = vst [vmem:[#allocation2 + $0x28] sm:$0xff] 0.0
    %30 = vst [vmem:[#allocation2 + $0x30] sm:$0xff] 0.0
    %31 = vst [vmem:[#allocation2 + $0x38] sm:$0xff] 0.0
    %32 = vst [vmem:[#allocation2 + $0x40] sm:$0xff] 0.0
    %33 = vst [vmem:[#allocation2 + $0x48] sm:$0xff] 0.0
    %34 = vst [vmem:[#allocation2 + $0x50] sm:$0xff] 0.0
    %35 = vst [vmem:[#allocation2 + $0x58] sm:$0xff] 0.0
    %36 = vst [vmem:[#allocation2 + $0x60] sm:$0xff] 0.0
    %37 = vst [vmem:[#allocation2 + $0x68] sm:$0xff] 0.0
    %38 = vst [vmem:[#allocation2 + $0x70] sm:$0xff] 0.0
    %39 = vst [vmem:[#allocation2 + $0x78] sm:$0xff] 0.0
  $region25: #{graphsage_forward.2} parent=0 // pred_fallthru
    _
  %v40 = vld [vmem:[#allocation2] sm:$0xff]
  %v41 = vld [vmem:[#allocation2 + $0x8] sm:$0xff]
  %v42 = vld [vmem:[#allocation2 + $0x10] sm:$0xff]
  %v43 = vld [vmem:[#allocation2 + $0x18] sm:$0xff]
  %v44 = vld [vmem:[#allocation2 + $0x20] sm:$0xff]
  %v45 = vld [vmem:[#allocation2 + $0x28] sm:$0xff]
  %v46 = vld [vmem:[#allocation2 + $0x30] sm:$0xff]
  %v47 = vld [vmem:[#allocation2 + $0x38] sm:$0xff]
  %v48 = vld [vmem:[#allocation2 + $0x40] sm:$0xff]
  %v49 = vld [vmem:[#allocation2 + $0x48] sm:$0xff]
  %v50 = vld [vmem:[#allocation2 + $0x50] sm:$0xff]
  %v51 = vld [vmem:[#allocation2 + $0x58] sm:$0xff]
  %v52 = vld [vmem:[#allocation2 + $0x60] sm:$0xff]
  %v53 = vld [vmem:[#allocation2 + $0x68] sm:$0xff]
  %v54 = vld [vmem:[#allocation2 + $0x70] sm:$0xff]
  %v55 = vld [vmem:[#allocation2 + $0x78] sm:$0xff]
  %v56 = vld [vmem:[%s0] sm:$0xf]
  %v57 = vld [vmem:[%s0 + $0x4] sm:$0xf]
  %v58 = vld [vmem:[%s0 + $0x8] sm:$0xf]
  %v59 = vld [vmem:[%s0 + $0xc] sm:$0xf]
  %v60 = vld [vmem:[%s0 + $0x10] sm:$0xf]
  %v61 = vld [vmem:[%s0 + $0x14] sm:$0xf]
  %v62 = vld [vmem:[%s0 + $0x18] sm:$0xf]
  %v63 = vld [vmem:[%s0 + $0x1c] sm:$0xf]
  %v64 = vld [vmem:[%s0 + $0x20] sm:$0xf]
  %v65 = vld [vmem:[%s0 + $0x24] sm:$0xf]
  %v66 = vld [vmem:[%s0 + $0x28] sm:$0xf]
  %v67 = vld [vmem:[%s0 + $0x2c] sm:$0xf]
  %v68 = vld [vmem:[%s0 + $0x30] sm:$0xf]
  %v69 = vld [vmem:[%s0 + $0x34] sm:$0xf]
  %v70 = vld [vmem:[%s0 + $0x38] sm:$0xf]
  %v71 = vld [vmem:[%s0 + $0x3c] sm:$0xf]
  %v72 = vld [vmem:[%s1] sm:$0xf]
  %v73 = vld [vmem:[%s1 + $0x4] sm:$0xf]
  %v74 = vld [vmem:[%s1 + $0x8] sm:$0xf]
  %v75 = vld [vmem:[%s1 + $0xc] sm:$0xf]
  %v76 = vld [vmem:[%s1 + $0x10] sm:$0xf]
  %v77 = vld [vmem:[%s1 + $0x14] sm:$0xf]
  %v78 = vld [vmem:[%s1 + $0x18] sm:$0xf]
  %v79 = vld [vmem:[%s1 + $0x1c] sm:$0xf]
  %v80 = vld [vmem:[%s1 + $0x20] sm:$0xf]
  %v81 = vld [vmem:[%s1 + $0x24] sm:$0xf]
  %v82 = vld [vmem:[%s1 + $0x28] sm:$0xf]
  %v83 = vld [vmem:[%s1 + $0x2c] sm:$0xf]
  %v84 = vld [vmem:[%s1 + $0x30] sm:$0xf]
  %v85 = vld [vmem:[%s1 + $0x34] sm:$0xf]
  %v86 = vld [vmem:[%s1 + $0x38] sm:$0xf]
  %v87 = vld [vmem:[%s1 + $0x3c] sm:$0xf]
  %v104 = vunpack.c.l.b16 %v56
  %v105 = vunpack.c.l.b16 %v57
  %v106 = vunpack.c.l.b16 %v58
  %v107 = vunpack.c.l.b16 %v59
  %v108 = vunpack.c.l.b16 %v60
  %v109 = vunpack.c.l.b16 %v61
  %v110 = vunpack.c.l.b16 %v62
  %v111 = vunpack.c.l.b16 %v63
  %v112 = vunpack.c.l.b16 %v64
  %v113 = vunpack.c.l.b16 %v65
  %v114 = vunpack.c.l.b16 %v66
  %v115 = vunpack.c.l.b16 %v67
  %v116 = vunpack.c.l.b16 %v68
  %v117 = vunpack.c.l.b16 %v69
  %v118 = vunpack.c.l.b16 %v70
  %v119 = vunpack.c.l.b16 %v71
  %v120 = vpack.c.b16 %v105, %v104
  %v121 = vpack.c.b16 %v107, %v106
  %v122 = vpack.c.b16 %v109, %v108
  %v123 = vpack.c.b16 %v111, %v110
  %v124 = vpack.c.b16 %v113, %v112
  %v125 = vpack.c.b16 %v115, %v114
  %v126 = vpack.c.b16 %v117, %v116
  %v127 = vpack.c.b16 %v119, %v118
  %v152 = vunpack.c.l.b16 %v72
  %v153 = vunpack.c.l.b16 %v73
  %v154 = vunpack.c.l.b16 %v74
  %v155 = vunpack.c.l.b16 %v75
  %v156 = vunpack.c.l.b16 %v76
  %v157 = vunpack.c.l.b16 %v77
  %v158 = vunpack.c.l.b16 %v78
  %v159 = vunpack.c.l.b16 %v79
  %v160 = vunpack.c.l.b16 %v80
  %v161 = vunpack.c.l.b16 %v81
  %v162 = vunpack.c.l.b16 %v82
  %v163 = vunpack.c.l.b16 %v83
  %v164 = vunpack.c.l.b16 %v84
  %v165 = vunpack.c.l.b16 %v85
  %v166 = vunpack.c.l.b16 %v86
  %v167 = vunpack.c.l.b16 %v87
  %v168 = vpack.c.b16 %v153, %v152
  %v169 = vpack.c.b16 %v155, %v154
  %v170 = vpack.c.b16 %v157, %v156
  %v171 = vpack.c.b16 %v159, %v158
  %v172 = vpack.c.b16 %v161, %v160
  %v173 = vpack.c.b16 %v163, %v162
  %v174 = vpack.c.b16 %v165, %v164
  %v175 = vpack.c.b16 %v167, %v166
  %184 = vmatpush.bf16.msra.mxu0 %v175
  %185 = vmatpush.bf16.msra.mxu0 %v174
  %186 = vmatpush.bf16.msra.mxu0 %v173
  %187 = vmatpush.bf16.msra.mxu0 %v172
  %188 = vmatpush.bf16.msra.mxu0 %v171
  %189 = vmatpush.bf16.msra.mxu0 %v170
  %190 = vmatpush.bf16.msra.mxu0 %v169
  %191 = vmatpush.bf16.msra.mxu0 %v168
  %192 = vmatmul.bf16.gmra.mxu0 %v120
  %v193 = vpop.f32.mrf.mxu0
  %v194 = vadd.f32 0.0, %v193
  %v195 = vpop.f32.mrf.mxu0
  %v196 = vadd.f32 0.0, %v195
  %197 = vmatmul.bf16.gmra.mxu0 %v121
  %v198 = vpop.f32.mrf.mxu0
  %v199 = vadd.f32 0.0, %v198
  %v200 = vpop.f32.mrf.mxu0
  %v201 = vadd.f32 0.0, %v200
  %202 = vmatmul.bf16.gmra.mxu0 %v122
  %v203 = vpop.f32.mrf.mxu0
  %v204 = vadd.f32 0.0, %v203
  %v205 = vpop.f32.mrf.mxu0
  %v206 = vadd.f32 0.0, %v205
  %207 = vmatmul.bf16.gmra.mxu0 %v123
  %v208 = vpop.f32.mrf.mxu0
  %v209 = vadd.f32 0.0, %v208
  %v210 = vpop.f32.mrf.mxu0
  %v211 = vadd.f32 0.0, %v210
  %212 = vmatmul.bf16.gmra.mxu0 %v124
  %v213 = vpop.f32.mrf.mxu0
  %v214 = vadd.f32 0.0, %v213
  %v215 = vpop.f32.mrf.mxu0
  %v216 = vadd.f32 0.0, %v215
  %217 = vmatmul.bf16.gmra.mxu0 %v125
  %v218 = vpop.f32.mrf.mxu0
  %v219 = vadd.f32 0.0, %v218
  %v220 = vpop.f32.mrf.mxu0
  %v221 = vadd.f32 0.0, %v220
  %222 = vmatmul.bf16.gmra.mxu0 %v126
  %v223 = vpop.f32.mrf.mxu0
  %v224 = vadd.f32 0.0, %v223
  %v225 = vpop.f32.mrf.mxu0
  %v226 = vadd.f32 0.0, %v225
  %227 = vmatmul.bf16.gmra.mxu0 %v127
  %v228 = vpop.f32.mrf.mxu0
  %v229 = vadd.f32 0.0, %v228
  %v230 = vpop.f32.mrf.mxu0
  %v231 = vadd.f32 0.0, %v230
  %232 = vdwg.mxu0
  %v233 = vadd.f32 %v40, %v194
  %v234 = vadd.f32 %v41, %v196
  %v235 = vadd.f32 %v42, %v199
  %v236 = vadd.f32 %v43, %v201
  %v237 = vadd.f32 %v44, %v204
  %v238 = vadd.f32 %v45, %v206
  %v239 = vadd.f32 %v46, %v209
  %v240 = vadd.f32 %v47, %v211
  %v241 = vadd.f32 %v48, %v214
  %v242 = vadd.f32 %v49, %v216
  %v243 = vadd.f32 %v50, %v219
  %v244 = vadd.f32 %v51, %v221
  %v245 = vadd.f32 %v52, %v224
  %v246 = vadd.f32 %v53, %v226
  %v247 = vadd.f32 %v54, %v229
  %v248 = vadd.f32 %v55, %v231
  %249 = vst [vmem:[#allocation2] sm:$0xff] %v233
  %250 = vst [vmem:[#allocation2 + $0x8] sm:$0xff] %v234
  %251 = vst [vmem:[#allocation2 + $0x10] sm:$0xff] %v235
  %252 = vst [vmem:[#allocation2 + $0x18] sm:$0xff] %v236
  %253 = vst [vmem:[#allocation2 + $0x20] sm:$0xff] %v237
  %254 = vst [vmem:[#allocation2 + $0x28] sm:$0xff] %v238
  %255 = vst [vmem:[#allocation2 + $0x30] sm:$0xff] %v239
  %256 = vst [vmem:[#allocation2 + $0x38] sm:$0xff] %v240
  %257 = vst [vmem:[#allocation2 + $0x40] sm:$0xff] %v241
  %258 = vst [vmem:[#allocation2 + $0x48] sm:$0xff] %v242
  %259 = vst [vmem:[#allocation2 + $0x50] sm:$0xff] %v243
  %260 = vst [vmem:[#allocation2 + $0x58] sm:$0xff] %v244
  %261 = vst [vmem:[#allocation2 + $0x60] sm:$0xff] %v245
  %262 = vst [vmem:[#allocation2 + $0x68] sm:$0xff] %v246
  %263 = vst [vmem:[#allocation2 + $0x70] sm:$0xff] %v247
  %264 = vst [vmem:[#allocation2 + $0x78] sm:$0xff] %v248
  // Predicated region
  $region26: #{graphsage_forward.2} parent=0 // pred_check
    %p265 = pneg %p20
  $region27: #{graphsage_forward.2} parent=0 // pred_check_branch
    %267 = sbr.rel (%p265) target = $region29
  $region28: #{graphsage_forward.2} parent=0 // pred_region
    %v268 = vld [vmem:[#allocation2] sm:$0xff]
    %v269 = vld [vmem:[#allocation2 + $0x8] sm:$0xff]
    %v270 = vld [vmem:[#allocation2 + $0x10] sm:$0xff]
    %v271 = vld [vmem:[#allocation2 + $0x18] sm:$0xff]
    %v272 = vld [vmem:[#allocation2 + $0x20] sm:$0xff]
    %v273 = vld [vmem:[#allocation2 + $0x28] sm:$0xff]
    %v274 = vld [vmem:[#allocation2 + $0x30] sm:$0xff]
    %v275 = vld [vmem:[#allocation2 + $0x38] sm:$0xff]
    %v276 = vld [vmem:[#allocation2 + $0x40] sm:$0xff]
    %v277 = vld [vmem:[#allocation2 + $0x48] sm:$0xff]
    %v278 = vld [vmem:[#allocation2 + $0x50] sm:$0xff]
    %v279 = vld [vmem:[#allocation2 + $0x58] sm:$0xff]
    %v280 = vld [vmem:[#allocation2 + $0x60] sm:$0xff]
    %v281 = vld [vmem:[#allocation2 + $0x68] sm:$0xff]
    %v282 = vld [vmem:[#allocation2 + $0x70] sm:$0xff]
    %v283 = vld [vmem:[#allocation2 + $0x78] sm:$0xff]
    %v284 = vpack.c.bf16 %v268, %v268
    %v285 = vpack.c.bf16 %v269, %v269
    %v286 = vpack.c.bf16 %v270, %v270
    %v287 = vpack.c.bf16 %v271, %v271
    %v288 = vpack.c.bf16 %v272, %v272
    %v289 = vpack.c.bf16 %v273, %v273
    %v290 = vpack.c.bf16 %v274, %v274
    %v291 = vpack.c.bf16 %v275, %v275
    %v292 = vpack.c.bf16 %v276, %v276
    %v293 = vpack.c.bf16 %v277, %v277
    %v294 = vpack.c.bf16 %v278, %v278
    %v295 = vpack.c.bf16 %v279, %v279
    %v296 = vpack.c.bf16 %v280, %v280
    %v297 = vpack.c.bf16 %v281, %v281
    %v298 = vpack.c.bf16 %v282, %v282
    %v299 = vpack.c.bf16 %v283, %v283
    %v300 = vld [vmem:[%s2] sm:$0xf]
    %v301 = vld [vmem:[%s2 + $0x4] sm:$0xf]
    %v302 = vld [vmem:[%s2 + $0x8] sm:$0xf]
    %v303 = vld [vmem:[%s2 + $0xc] sm:$0xf]
    %v304 = vld [vmem:[%s2 + $0x10] sm:$0xf]
    %v305 = vld [vmem:[%s2 + $0x14] sm:$0xf]
    %v306 = vld [vmem:[%s2 + $0x18] sm:$0xf]
    %v307 = vld [vmem:[%s2 + $0x1c] sm:$0xf]
    %v308 = vld [vmem:[%s2 + $0x20] sm:$0xf]
    %v309 = vld [vmem:[%s2 + $0x24] sm:$0xf]
    %v310 = vld [vmem:[%s2 + $0x28] sm:$0xf]
    %v311 = vld [vmem:[%s2 + $0x2c] sm:$0xf]
    %v312 = vld [vmem:[%s2 + $0x30] sm:$0xf]
    %v313 = vld [vmem:[%s2 + $0x34] sm:$0xf]
    %v314 = vld [vmem:[%s2 + $0x38] sm:$0xf]
    %v315 = vld [vmem:[%s2 + $0x3c] sm:$0xf]
    %v332 = vunpack.c.l.b16 %v284
    %v333 = vunpack.c.l.b16 %v285
    %v334 = vunpack.c.l.b16 %v286
    %v335 = vunpack.c.l.b16 %v287
    %v336 = vunpack.c.l.b16 %v288
    %v337 = vunpack.c.l.b16 %v289
    %v338 = vunpack.c.l.b16 %v290
    %v339 = vunpack.c.l.b16 %v291
    %v340 = vunpack.c.l.b16 %v292
    %v341 = vunpack.c.l.b16 %v293
    %v342 = vunpack.c.l.b16 %v294
    %v343 = vunpack.c.l.b16 %v295
    %v344 = vunpack.c.l.b16 %v296
    %v345 = vunpack.c.l.b16 %v297
    %v346 = vunpack.c.l.b16 %v298
    %v347 = vunpack.c.l.b16 %v299
    %v348 = vpack.c.b16 %v333, %v332
    %v349 = vpack.c.b16 %v335, %v334
    %v350 = vpack.c.b16 %v337, %v336
    %v351 = vpack.c.b16 %v339, %v338
    %v352 = vpack.c.b16 %v341, %v340
    %v353 = vpack.c.b16 %v343, %v342
    %v354 = vpack.c.b16 %v345, %v344
    %v355 = vpack.c.b16 %v347, %v346
    %v380 = vunpack.c.l.b16 %v300
    %v381 = vunpack.c.l.b16 %v301
    %v382 = vunpack.c.l.b16 %v302
    %v383 = vunpack.c.l.b16 %v303
    %v384 = vunpack.c.l.b16 %v304
    %v385 = vunpack.c.l.b16 %v305
    %v386 = vunpack.c.l.b16 %v306
    %v387 = vunpack.c.l.b16 %v307
    %v388 = vunpack.c.l.b16 %v308
    %v389 = vunpack.c.l.b16 %v309
    %v390 = vunpack.c.l.b16 %v310
    %v391 = vunpack.c.l.b16 %v311
    %v392 = vunpack.c.l.b16 %v312
    %v393 = vunpack.c.l.b16 %v313
    %v394 = vunpack.c.l.b16 %v314
    %v395 = vunpack.c.l.b16 %v315
    %v396 = vpack.c.b16 %v381, %v380
    %v397 = vpack.c.b16 %v383, %v382
    %v398 = vpack.c.b16 %v385, %v384
    %v399 = vpack.c.b16 %v387, %v386
    %v400 = vpack.c.b16 %v389, %v388
    %v401 = vpack.c.b16 %v391, %v390
    %v402 = vpack.c.b16 %v393, %v392
    %v403 = vpack.c.b16 %v395, %v394
    %v412 = vld [vmem:[%s3] sm:$0xf]
    %v413 = vld [vmem:[%s3 + $0x4] sm:$0xf]
    %v414 = vld [vmem:[%s3 + $0x8] sm:$0xf]
    %v415 = vld [vmem:[%s3 + $0xc] sm:$0xf]
    %v416 = vld [vmem:[%s3 + $0x10] sm:$0xf]
    %v417 = vld [vmem:[%s3 + $0x14] sm:$0xf]
    %v418 = vld [vmem:[%s3 + $0x18] sm:$0xf]
    %v419 = vld [vmem:[%s3 + $0x1c] sm:$0xf]
    %v420 = vld [vmem:[%s3 + $0x20] sm:$0xf]
    %v421 = vld [vmem:[%s3 + $0x24] sm:$0xf]
    %v422 = vld [vmem:[%s3 + $0x28] sm:$0xf]
    %v423 = vld [vmem:[%s3 + $0x2c] sm:$0xf]
    %v424 = vld [vmem:[%s3 + $0x30] sm:$0xf]
    %v425 = vld [vmem:[%s3 + $0x34] sm:$0xf]
    %v426 = vld [vmem:[%s3 + $0x38] sm:$0xf]
    %v427 = vld [vmem:[%s3 + $0x3c] sm:$0xf]
    %v428 = vld [vmem:[%s3 + $0x40] sm:$0xf]
    %v429 = vld [vmem:[%s3 + $0x44] sm:$0xf]
    %v430 = vld [vmem:[%s3 + $0x48] sm:$0xf]
    %v431 = vld [vmem:[%s3 + $0x4c] sm:$0xf]
    %v432 = vld [vmem:[%s3 + $0x50] sm:$0xf]
    %v433 = vld [vmem:[%s3 + $0x54] sm:$0xf]
    %v434 = vld [vmem:[%s3 + $0x58] sm:$0xf]
    %v435 = vld [vmem:[%s3 + $0x5c] sm:$0xf]
    %v436 = vld [vmem:[%s3 + $0x60] sm:$0xf]
    %v437 = vld [vmem:[%s3 + $0x64] sm:$0xf]
    %v438 = vld [vmem:[%s3 + $0x68] sm:$0xf]
    %v439 = vld [vmem:[%s3 + $0x6c] sm:$0xf]
    %v440 = vld [vmem:[%s3 + $0x70] sm:$0xf]
    %v441 = vld [vmem:[%s3 + $0x74] sm:$0xf]
    %v442 = vld [vmem:[%s3 + $0x78] sm:$0xf]
    %v443 = vld [vmem:[%s3 + $0x7c] sm:$0xf]
    %v444 = vld [vmem:[%s4] sm:$0x1]
    %v446 = vperm.slane %v444, 0
    %v480 = vunpack.c.l.b16 %v412
    %v481 = vunpack.c.l.b16 %v413
    %v482 = vunpack.c.l.b16 %v414
    %v483 = vunpack.c.l.b16 %v415
    %v484 = vunpack.c.l.b16 %v416
    %v485 = vunpack.c.l.b16 %v417
    %v486 = vunpack.c.l.b16 %v418
    %v487 = vunpack.c.l.b16 %v419
    %v488 = vunpack.c.l.b16 %v420
    %v489 = vunpack.c.l.b16 %v421
    %v490 = vunpack.c.l.b16 %v422
    %v491 = vunpack.c.l.b16 %v423
    %v492 = vunpack.c.l.b16 %v424
    %v493 = vunpack.c.l.b16 %v425
    %v494 = vunpack.c.l.b16 %v426
    %v495 = vunpack.c.l.b16 %v427
    %v496 = vunpack.c.l.b16 %v428
    %v497 = vunpack.c.l.b16 %v429
    %v498 = vunpack.c.l.b16 %v430
    %v499 = vunpack.c.l.b16 %v431
    %v500 = vunpack.c.l.b16 %v432
    %v501 = vunpack.c.l.b16 %v433
    %v502 = vunpack.c.l.b16 %v434
    %v503 = vunpack.c.l.b16 %v435
    %v504 = vunpack.c.l.b16 %v436
    %v505 = vunpack.c.l.b16 %v437
    %v506 = vunpack.c.l.b16 %v438
    %v507 = vunpack.c.l.b16 %v439
    %v508 = vunpack.c.l.b16 %v440
    %v509 = vunpack.c.l.b16 %v441
    %v510 = vunpack.c.l.b16 %v442
    %v511 = vunpack.c.l.b16 %v443
    %v512 = vpack.c.b16 %v481, %v480
    %v513 = vpack.c.b16 %v483, %v482
    %v514 = vpack.c.b16 %v485, %v484
    %v515 = vpack.c.b16 %v487, %v486
    %v516 = vpack.c.b16 %v489, %v488
    %v517 = vpack.c.b16 %v491, %v490
    %v518 = vpack.c.b16 %v493, %v492
    %v519 = vpack.c.b16 %v495, %v494
    %v520 = vpack.c.b16 %v497, %v496
    %v521 = vpack.c.b16 %v499, %v498
    %v522 = vpack.c.b16 %v501, %v500
    %v523 = vpack.c.b16 %v503, %v502
    %v524 = vpack.c.b16 %v505, %v504
    %v525 = vpack.c.b16 %v507, %v506
    %v526 = vpack.c.b16 %v509, %v508
    %v527 = vpack.c.b16 %v511, %v510
    %544 = vmatpush.bf16.msra.mxu0 %v519
    %545 = vmatpush.bf16.msra.mxu0 %v518
    %546 = vmatpush.bf16.msra.mxu0 %v517
    %547 = vmatpush.bf16.msra.mxu0 %v516
    %548 = vmatpush.bf16.msra.mxu0 %v515
    %549 = vmatpush.bf16.msra.mxu0 %v514
    %550 = vmatpush.bf16.msra.mxu0 %v513
    %551 = vmatpush.bf16.msra.mxu0 %v512
    %552 = vmatmul.bf16.gmra.mxu0 %v348
    %v553 = vpop.f32.mrf.mxu0
    %v554 = vadd.f32 %v446, %v553
    %v555 = vpop.f32.mrf.mxu0
    %v556 = vadd.f32 %v446, %v555
    %557 = vmatmul.bf16.gmra.mxu0 %v349
    %v558 = vpop.f32.mrf.mxu0
    %v559 = vadd.f32 %v446, %v558
    %v560 = vpop.f32.mrf.mxu0
    %v561 = vadd.f32 %v446, %v560
    %562 = vmatmul.bf16.gmra.mxu0 %v350
    %v563 = vpop.f32.mrf.mxu0
    %v564 = vadd.f32 %v446, %v563
    %v565 = vpop.f32.mrf.mxu0
    %v566 = vadd.f32 %v446, %v565
    %567 = vmatmul.bf16.gmra.mxu0 %v351
    %v568 = vpop.f32.mrf.mxu0
    %v569 = vadd.f32 %v446, %v568
    %v570 = vpop.f32.mrf.mxu0
    %v571 = vadd.f32 %v446, %v570
    %572 = vmatmul.bf16.gmra.mxu0 %v352
    %v573 = vpop.f32.mrf.mxu0
    %v574 = vadd.f32 %v446, %v573
    %v575 = vpop.f32.mrf.mxu0
    %v576 = vadd.f32 %v446, %v575
    %577 = vmatmul.bf16.gmra.mxu0 %v353
    %v578 = vpop.f32.mrf.mxu0
    %v579 = vadd.f32 %v446, %v578
    %v580 = vpop.f32.mrf.mxu0
    %v581 = vadd.f32 %v446, %v580
    %582 = vmatmul.bf16.gmra.mxu0 %v354
    %v583 = vpop.f32.mrf.mxu0
    %v584 = vadd.f32 %v446, %v583
    %v585 = vpop.f32.mrf.mxu0
    %v586 = vadd.f32 %v446, %v585
    %587 = vmatmul.bf16.gmra.mxu0 %v355
    %v588 = vpop.f32.mrf.mxu0
    %v589 = vadd.f32 %v446, %v588
    %v590 = vpop.f32.mrf.mxu0
    %v591 = vadd.f32 %v446, %v590
    %592 = vdwg.mxu0
    %593 = vmatpush.bf16.msra.mxu0 %v527
    %594 = vmatpush.bf16.msra.mxu0 %v526
    %595 = vmatpush.bf16.msra.mxu0 %v525
    %596 = vmatpush.bf16.msra.mxu0 %v524
    %597 = vmatpush.bf16.msra.mxu0 %v523
    %598 = vmatpush.bf16.msra.mxu0 %v522
    %599 = vmatpush.bf16.msra.mxu0 %v521
    %600 = vmatpush.bf16.msra.mxu0 %v520
    %601 = vmatmul.bf16.gmra.mxu0 %v396
    %v602 = vpop.f32.mrf.mxu0
    %v603 = vadd.f32 %v554, %v602
    %v604 = vpop.f32.mrf.mxu0
    %v605 = vadd.f32 %v556, %v604
    %606 = vmatmul.bf16.gmra.mxu0 %v397
    %v607 = vpop.f32.mrf.mxu0
    %v608 = vadd.f32 %v559, %v607
    %v609 = vpop.f32.mrf.mxu0
    %v610 = vadd.f32 %v561, %v609
    %611 = vmatmul.bf16.gmra.mxu0 %v398
    %v612 = vpop.f32.mrf.mxu0
    %v613 = vadd.f32 %v564, %v612
    %v614 = vpop.f32.mrf.mxu0
    %v615 = vadd.f32 %v566, %v614
    %616 = vmatmul.bf16.gmra.mxu0 %v399
    %v617 = vpop.f32.mrf.mxu0
    %v618 = vadd.f32 %v569, %v617
    %v619 = vpop.f32.mrf.mxu0
    %v620 = vadd.f32 %v571, %v619
    %621 = vmatmul.bf16.gmra.mxu0 %v400
    %v622 = vpop.f32.mrf.mxu0
    %v623 = vadd.f32 %v574, %v622
    %v624 = vpop.f32.mrf.mxu0
    %v625 = vadd.f32 %v576, %v624
    %626 = vmatmul.bf16.gmra.mxu0 %v401
    %v627 = vpop.f32.mrf.mxu0
    %v628 = vadd.f32 %v579, %v627
    %v629 = vpop.f32.mrf.mxu0
    %v630 = vadd.f32 %v581, %v629
    %631 = vmatmul.bf16.gmra.mxu0 %v402
    %v632 = vpop.f32.mrf.mxu0
    %v633 = vadd.f32 %v584, %v632
    %v634 = vpop.f32.mrf.mxu0
    %v635 = vadd.f32 %v586, %v634
    %636 = vmatmul.bf16.gmra.mxu0 %v403
    %v637 = vpop.f32.mrf.mxu0
    %v638 = vadd.f32 %v589, %v637
    %v639 = vpop.f32.mrf.mxu0
    %v640 = vadd.f32 %v591, %v639
    %641 = vdwg.mxu0
    %v642 = vmax.f32 %v603, 0.0
    %v643 = vmax.f32 %v605, 0.0
    %v644 = vmax.f32 %v608, 0.0
    %v645 = vmax.f32 %v610, 0.0
    %v646 = vmax.f32 %v613, 0.0
    %v647 = vmax.f32 %v615, 0.0
    %v648 = vmax.f32 %v618, 0.0
    %v649 = vmax.f32 %v620, 0.0
    %v650 = vmax.f32 %v623, 0.0
    %v651 = vmax.f32 %v625, 0.0
    %v652 = vmax.f32 %v628, 0.0
    %v653 = vmax.f32 %v630, 0.0
    %v654 = vmax.f32 %v633, 0.0
    %v655 = vmax.f32 %v635, 0.0
    %v656 = vmax.f32 %v638, 0.0
    %v657 = vmax.f32 %v640, 0.0
    %v658 = vpack.c.bf16 %v642, %v642
    %v659 = vpack.c.bf16 %v643, %v643
    %v660 = vpack.c.bf16 %v644, %v644
    %v661 = vpack.c.bf16 %v645, %v645
    %v662 = vpack.c.bf16 %v646, %v646
    %v663 = vpack.c.bf16 %v647, %v647
    %v664 = vpack.c.bf16 %v648, %v648
    %v665 = vpack.c.bf16 %v649, %v649
    %v666 = vpack.c.bf16 %v650, %v650
    %v667 = vpack.c.bf16 %v651, %v651
    %v668 = vpack.c.bf16 %v652, %v652
    %v669 = vpack.c.bf16 %v653, %v653
    %v670 = vpack.c.bf16 %v654, %v654
    %v671 = vpack.c.bf16 %v655, %v655
    %v672 = vpack.c.bf16 %v656, %v656
    %v673 = vpack.c.bf16 %v657, %v657
    %674 = vst [vmem:[%s5] sm:$0xf] %v658
    %675 = vst [vmem:[%s5 + $0x4] sm:$0xf] %v659
    %676 = vst [vmem:[%s5 + $0x8] sm:$0xf] %v660
    %677 = vst [vmem:[%s5 + $0xc] sm:$0xf] %v661
    %678 = vst [vmem:[%s5 + $0x10] sm:$0xf] %v662
    %679 = vst [vmem:[%s5 + $0x14] sm:$0xf] %v663
    %680 = vst [vmem:[%s5 + $0x18] sm:$0xf] %v664
    %681 = vst [vmem:[%s5 + $0x1c] sm:$0xf] %v665
    %682 = vst [vmem:[%s5 + $0x20] sm:$0xf] %v666
    %683 = vst [vmem:[%s5 + $0x24] sm:$0xf] %v667
    %684 = vst [vmem:[%s5 + $0x28] sm:$0xf] %v668
    %685 = vst [vmem:[%s5 + $0x2c] sm:$0xf] %v669
    %686 = vst [vmem:[%s5 + $0x30] sm:$0xf] %v670
    %687 = vst [vmem:[%s5 + $0x34] sm:$0xf] %v671
    %688 = vst [vmem:[%s5 + $0x38] sm:$0xf] %v672
    %689 = vst [vmem:[%s5 + $0x3c] sm:$0xf] %v673
  $region29: #{graphsage_forward.2} parent=0 // pred_fallthru
    _
  // Predicated region
  $region30: #{graphsage_forward.2} parent=0 // pred_check
    _
  $region31: #{graphsage_forward.2} parent=0 // pred_check_branch
    %691 = sbr.rel (0) target = $region33
  $region32: #{graphsage_forward.2} parent=0 // pred_region
    _
  $region33: #{graphsage_forward.2} parent=0 // pred_fallthru
    _
  // Predicated region
  $region34: #{graphsage_forward.2} parent=0 // pred_check
    _
  $region35: #{graphsage_forward.2} parent=0 // pred_check_branch
    %693 = sbr.rel (0) target = $region37
  $region36: #{graphsage_forward.2} parent=0 // pred_region
    _
  $region37: #{graphsage_forward.2} parent=0 // pred_fallthru
    _

// kernel: graphsage_forward.3
$region0: #{graphsage_forward.3}
  #allocation0 [shape = 'u32[]', space=smem, size = 0x4, offset = 0x4, fixed_abs, tag = 'smem constant byte address 0x4 - core index']
  #allocation1 [shape = 'u32[72,128]{1,0:T(1,128)}', space=vmem, size = 0x9000, scoped, tag = 'internal scratch']
  #allocation2 [shape = 'f32[128,128]{1,0:T(8,128)}', space=vmem, size = 0x10000, scoped, tag = 'scratch operand']
  %s0 = inlined_call_operand.vmem [shape: bf16[128,128], index: 0, kind: input, shape index: {}]
  %s1 = inlined_call_operand.vmem [shape: bf16[128,128], index: 1, kind: input, shape index: {}, may-alias: {1,2}]
  %s2 = inlined_call_operand.vmem [shape: bf16[128,128], index: 2, kind: input, shape index: {}, may-alias: {1,2}]
  %s3 = inlined_call_operand.vmem [shape: bf16[256,128], index: 3, kind: input, shape index: {}]
  %s4 = inlined_call_operand.vmem [shape: f32[1,128], index: 4, kind: input, shape index: {}]
  %s5 = inlined_call_operand.vmem [shape: bf16[128,128], index: 5, kind: input, shape index: {}]
  %s6 = inlined_call_operand.vmem [shape: f32[1,128], index: 6, kind: input, shape index: {}]
  %s7 = inlined_call_operand.vmem [shape: f32[128,128], index: 7, kind: output, shape index: {0}]
  %s8 = inlined_call_operand.vmem [shape: f32[128,128], index: 8, kind: output, shape index: {1}]
  %9 = xla_tuple %s7, %s8
  %s10 = sld [smem:[#allocation0]]
  $region54: #{graphsage_forward.3} parent=0
    _
  %s12 = ssub.s32 1, %s10
  %s13 = scalar_select 0, %s12, %s10
  // Predicated region
  $region2: #{graphsage_forward.3} parent=0 // pred_check
    _
  $region3: #{graphsage_forward.3} parent=0 // pred_check_branch
    %15 = sbr.rel (0) target = $region5
  $region4: #{graphsage_forward.3} parent=0 // pred_region
    _
  $region5: #{graphsage_forward.3} parent=0 // pred_fallthru
    _
  // Predicated region
  $region6: #{graphsage_forward.3} parent=0 // pred_check
    _
  $region7: #{graphsage_forward.3} parent=0 // pred_check_branch
    %17 = sbr.rel (0) target = $region9
  $region8: #{graphsage_forward.3} parent=0 // pred_region
    _
  $region9: #{graphsage_forward.3} parent=0 // pred_fallthru
    _
  // Predicated region
  $region10: #{graphsage_forward.3} parent=0 // pred_check
    _
  $region11: #{graphsage_forward.3} parent=0 // pred_check_branch
    %19 = sbr.rel (0) target = $region13
  $region12: #{graphsage_forward.3} parent=0 // pred_region
    _
  $region13: #{graphsage_forward.3} parent=0 // pred_fallthru
    _
  // Predicated region
  $region14: #{graphsage_forward.3} parent=0 // pred_check
    _
  $region15: #{graphsage_forward.3} parent=0 // pred_check_branch
    %21 = sbr.rel (0) target = $region17
  $region16: #{graphsage_forward.3} parent=0 // pred_region
    _
  $region17: #{graphsage_forward.3} parent=0 // pred_fallthru
    _
  // Predicated region
  $region18: #{graphsage_forward.3} parent=0 // pred_check
    _
  $region19: #{graphsage_forward.3} parent=0 // pred_check_branch
    %23 = sbr.rel (0) target = $region21
  $region20: #{graphsage_forward.3} parent=0 // pred_region
    _
  $region21: #{graphsage_forward.3} parent=0 // pred_fallthru
    _
  // Predicated region
  $region22: #{graphsage_forward.3} parent=0 // pred_check
    _
  $region23: #{graphsage_forward.3} parent=0 // pred_check_branch
    %25 = sbr.rel (0) target = $region25
  $region24: #{graphsage_forward.3} parent=0 // pred_region
    _
  $region25: #{graphsage_forward.3} parent=0 // pred_fallthru
    _
  // Predicated region
  $region26: #{graphsage_forward.3} parent=0 // pred_check
    _
  $region27: #{graphsage_forward.3} parent=0 // pred_check_branch
    %27 = sbr.rel (0) target = $region29
  $region28: #{graphsage_forward.3} parent=0 // pred_region
    _
  $region29: #{graphsage_forward.3} parent=0 // pred_fallthru
    _
  %p28 = scmp.eq.s32.totalorder 0, 0
  // Predicated region
  $region30: #{graphsage_forward.3} parent=0 // pred_check
    %p29 = pneg %p28
  $region31: #{graphsage_forward.3} parent=0 // pred_check_branch
    %31 = sbr.rel (%p29) target = $region33
  $region32: #{graphsage_forward.3} parent=0 // pred_region
    %32 = vst [vmem:[#allocation2] sm:$0xff] 0.0
    %33 = vst [vmem:[#allocation2 + $0x8] sm:$0xff] 0.0
    %34 = vst [vmem:[#allocation2 + $0x10] sm:$0xff] 0.0
    %35 = vst [vmem:[#allocation2 + $0x18] sm:$0xff] 0.0
    %36 = vst [vmem:[#allocation2 + $0x20] sm:$0xff] 0.0
    %37 = vst [vmem:[#allocation2 + $0x28] sm:$0xff] 0.0
    %38 = vst [vmem:[#allocation2 + $0x30] sm:$0xff] 0.0
    %39 = vst [vmem:[#allocation2 + $0x38] sm:$0xff] 0.0
    %40 = vst [vmem:[#allocation2 + $0x40] sm:$0xff] 0.0
    %41 = vst [vmem:[#allocation2 + $0x48] sm:$0xff] 0.0
    %42 = vst [vmem:[#allocation2 + $0x50] sm:$0xff] 0.0
    %43 = vst [vmem:[#allocation2 + $0x58] sm:$0xff] 0.0
    %44 = vst [vmem:[#allocation2 + $0x60] sm:$0xff] 0.0
    %45 = vst [vmem:[#allocation2 + $0x68] sm:$0xff] 0.0
    %46 = vst [vmem:[#allocation2 + $0x70] sm:$0xff] 0.0
    %47 = vst [vmem:[#allocation2 + $0x78] sm:$0xff] 0.0
  $region33: #{graphsage_forward.3} parent=0 // pred_fallthru
    _
  %v48 = vld [vmem:[#allocation2] sm:$0xff]
  %v49 = vld [vmem:[#allocation2 + $0x8] sm:$0xff]
  %v50 = vld [vmem:[#allocation2 + $0x10] sm:$0xff]
  %v51 = vld [vmem:[#allocation2 + $0x18] sm:$0xff]
  %v52 = vld [vmem:[#allocation2 + $0x20] sm:$0xff]
  %v53 = vld [vmem:[#allocation2 + $0x28] sm:$0xff]
  %v54 = vld [vmem:[#allocation2 + $0x30] sm:$0xff]
  %v55 = vld [vmem:[#allocation2 + $0x38] sm:$0xff]
  %v56 = vld [vmem:[#allocation2 + $0x40] sm:$0xff]
  %v57 = vld [vmem:[#allocation2 + $0x48] sm:$0xff]
  %v58 = vld [vmem:[#allocation2 + $0x50] sm:$0xff]
  %v59 = vld [vmem:[#allocation2 + $0x58] sm:$0xff]
  %v60 = vld [vmem:[#allocation2 + $0x60] sm:$0xff]
  %v61 = vld [vmem:[#allocation2 + $0x68] sm:$0xff]
  %v62 = vld [vmem:[#allocation2 + $0x70] sm:$0xff]
  %v63 = vld [vmem:[#allocation2 + $0x78] sm:$0xff]
  %v64 = vld [vmem:[%s0] sm:$0xf]
  %v65 = vld [vmem:[%s0 + $0x4] sm:$0xf]
  %v66 = vld [vmem:[%s0 + $0x8] sm:$0xf]
  %v67 = vld [vmem:[%s0 + $0xc] sm:$0xf]
  %v68 = vld [vmem:[%s0 + $0x10] sm:$0xf]
  %v69 = vld [vmem:[%s0 + $0x14] sm:$0xf]
  %v70 = vld [vmem:[%s0 + $0x18] sm:$0xf]
  %v71 = vld [vmem:[%s0 + $0x1c] sm:$0xf]
  %v72 = vld [vmem:[%s0 + $0x20] sm:$0xf]
  %v73 = vld [vmem:[%s0 + $0x24] sm:$0xf]
  %v74 = vld [vmem:[%s0 + $0x28] sm:$0xf]
  %v75 = vld [vmem:[%s0 + $0x2c] sm:$0xf]
  %v76 = vld [vmem:[%s0 + $0x30] sm:$0xf]
  %v77 = vld [vmem:[%s0 + $0x34] sm:$0xf]
  %v78 = vld [vmem:[%s0 + $0x38] sm:$0xf]
  %v79 = vld [vmem:[%s0 + $0x3c] sm:$0xf]
  %v80 = vld [vmem:[%s1] sm:$0xf]
  %v81 = vld [vmem:[%s1 + $0x4] sm:$0xf]
  %v82 = vld [vmem:[%s1 + $0x8] sm:$0xf]
  %v83 = vld [vmem:[%s1 + $0xc] sm:$0xf]
  %v84 = vld [vmem:[%s1 + $0x10] sm:$0xf]
  %v85 = vld [vmem:[%s1 + $0x14] sm:$0xf]
  %v86 = vld [vmem:[%s1 + $0x18] sm:$0xf]
  %v87 = vld [vmem:[%s1 + $0x1c] sm:$0xf]
  %v88 = vld [vmem:[%s1 + $0x20] sm:$0xf]
  %v89 = vld [vmem:[%s1 + $0x24] sm:$0xf]
  %v90 = vld [vmem:[%s1 + $0x28] sm:$0xf]
  %v91 = vld [vmem:[%s1 + $0x2c] sm:$0xf]
  %v92 = vld [vmem:[%s1 + $0x30] sm:$0xf]
  %v93 = vld [vmem:[%s1 + $0x34] sm:$0xf]
  %v94 = vld [vmem:[%s1 + $0x38] sm:$0xf]
  %v95 = vld [vmem:[%s1 + $0x3c] sm:$0xf]
  %v112 = vunpack.c.l.b16 %v64
  %v113 = vunpack.c.l.b16 %v65
  %v114 = vunpack.c.l.b16 %v66
  %v115 = vunpack.c.l.b16 %v67
  %v116 = vunpack.c.l.b16 %v68
  %v117 = vunpack.c.l.b16 %v69
  %v118 = vunpack.c.l.b16 %v70
  %v119 = vunpack.c.l.b16 %v71
  %v120 = vunpack.c.l.b16 %v72
  %v121 = vunpack.c.l.b16 %v73
  %v122 = vunpack.c.l.b16 %v74
  %v123 = vunpack.c.l.b16 %v75
  %v124 = vunpack.c.l.b16 %v76
  %v125 = vunpack.c.l.b16 %v77
  %v126 = vunpack.c.l.b16 %v78
  %v127 = vunpack.c.l.b16 %v79
  %v128 = vpack.c.b16 %v113, %v112
  %v129 = vpack.c.b16 %v115, %v114
  %v130 = vpack.c.b16 %v117, %v116
  %v131 = vpack.c.b16 %v119, %v118
  %v132 = vpack.c.b16 %v121, %v120
  %v133 = vpack.c.b16 %v123, %v122
  %v134 = vpack.c.b16 %v125, %v124
  %v135 = vpack.c.b16 %v127, %v126
  %v160 = vunpack.c.l.b16 %v80
  %v161 = vunpack.c.l.b16 %v81
  %v162 = vunpack.c.l.b16 %v82
  %v163 = vunpack.c.l.b16 %v83
  %v164 = vunpack.c.l.b16 %v84
  %v165 = vunpack.c.l.b16 %v85
  %v166 = vunpack.c.l.b16 %v86
  %v167 = vunpack.c.l.b16 %v87
  %v168 = vunpack.c.l.b16 %v88
  %v169 = vunpack.c.l.b16 %v89
  %v170 = vunpack.c.l.b16 %v90
  %v171 = vunpack.c.l.b16 %v91
  %v172 = vunpack.c.l.b16 %v92
  %v173 = vunpack.c.l.b16 %v93
  %v174 = vunpack.c.l.b16 %v94
  %v175 = vunpack.c.l.b16 %v95
  %v176 = vpack.c.b16 %v161, %v160
  %v177 = vpack.c.b16 %v163, %v162
  %v178 = vpack.c.b16 %v165, %v164
  %v179 = vpack.c.b16 %v167, %v166
  %v180 = vpack.c.b16 %v169, %v168
  %v181 = vpack.c.b16 %v171, %v170
  %v182 = vpack.c.b16 %v173, %v172
  %v183 = vpack.c.b16 %v175, %v174
  %192 = vmatpush.bf16.msra.mxu0 %v183
  %193 = vmatpush.bf16.msra.mxu0 %v182
  %194 = vmatpush.bf16.msra.mxu0 %v181
  %195 = vmatpush.bf16.msra.mxu0 %v180
  %196 = vmatpush.bf16.msra.mxu0 %v179
  %197 = vmatpush.bf16.msra.mxu0 %v178
  %198 = vmatpush.bf16.msra.mxu0 %v177
  %199 = vmatpush.bf16.msra.mxu0 %v176
  %200 = vmatmul.bf16.gmra.mxu0 %v128
  %v201 = vpop.f32.mrf.mxu0
  %v202 = vadd.f32 0.0, %v201
  %v203 = vpop.f32.mrf.mxu0
  %v204 = vadd.f32 0.0, %v203
  %205 = vmatmul.bf16.gmra.mxu0 %v129
  %v206 = vpop.f32.mrf.mxu0
  %v207 = vadd.f32 0.0, %v206
  %v208 = vpop.f32.mrf.mxu0
  %v209 = vadd.f32 0.0, %v208
  %210 = vmatmul.bf16.gmra.mxu0 %v130
  %v211 = vpop.f32.mrf.mxu0
  %v212 = vadd.f32 0.0, %v211
  %v213 = vpop.f32.mrf.mxu0
  %v214 = vadd.f32 0.0, %v213
  %215 = vmatmul.bf16.gmra.mxu0 %v131
  %v216 = vpop.f32.mrf.mxu0
  %v217 = vadd.f32 0.0, %v216
  %v218 = vpop.f32.mrf.mxu0
  %v219 = vadd.f32 0.0, %v218
  %220 = vmatmul.bf16.gmra.mxu0 %v132
  %v221 = vpop.f32.mrf.mxu0
  %v222 = vadd.f32 0.0, %v221
  %v223 = vpop.f32.mrf.mxu0
  %v224 = vadd.f32 0.0, %v223
  %225 = vmatmul.bf16.gmra.mxu0 %v133
  %v226 = vpop.f32.mrf.mxu0
  %v227 = vadd.f32 0.0, %v226
  %v228 = vpop.f32.mrf.mxu0
  %v229 = vadd.f32 0.0, %v228
  %230 = vmatmul.bf16.gmra.mxu0 %v134
  %v231 = vpop.f32.mrf.mxu0
  %v232 = vadd.f32 0.0, %v231
  %v233 = vpop.f32.mrf.mxu0
  %v234 = vadd.f32 0.0, %v233
  %235 = vmatmul.bf16.gmra.mxu0 %v135
  %v236 = vpop.f32.mrf.mxu0
  %v237 = vadd.f32 0.0, %v236
  %v238 = vpop.f32.mrf.mxu0
  %v239 = vadd.f32 0.0, %v238
  %240 = vdwg.mxu0
  %v241 = vadd.f32 %v48, %v202
  %v242 = vadd.f32 %v49, %v204
  %v243 = vadd.f32 %v50, %v207
  %v244 = vadd.f32 %v51, %v209
  %v245 = vadd.f32 %v52, %v212
  %v246 = vadd.f32 %v53, %v214
  %v247 = vadd.f32 %v54, %v217
  %v248 = vadd.f32 %v55, %v219
  %v249 = vadd.f32 %v56, %v222
  %v250 = vadd.f32 %v57, %v224
  %v251 = vadd.f32 %v58, %v227
  %v252 = vadd.f32 %v59, %v229
  %v253 = vadd.f32 %v60, %v232
  %v254 = vadd.f32 %v61, %v234
  %v255 = vadd.f32 %v62, %v237
  %v256 = vadd.f32 %v63, %v239
  %257 = vst [vmem:[#allocation2] sm:$0xff] %v241
  %258 = vst [vmem:[#allocation2 + $0x8] sm:$0xff] %v242
  %259 = vst [vmem:[#allocation2 + $0x10] sm:$0xff] %v243
  %260 = vst [vmem:[#allocation2 + $0x18] sm:$0xff] %v244
  %261 = vst [vmem:[#allocation2 + $0x20] sm:$0xff] %v245
  %262 = vst [vmem:[#allocation2 + $0x28] sm:$0xff] %v246
  %263 = vst [vmem:[#allocation2 + $0x30] sm:$0xff] %v247
  %264 = vst [vmem:[#allocation2 + $0x38] sm:$0xff] %v248
  %265 = vst [vmem:[#allocation2 + $0x40] sm:$0xff] %v249
  %266 = vst [vmem:[#allocation2 + $0x48] sm:$0xff] %v250
  %267 = vst [vmem:[#allocation2 + $0x50] sm:$0xff] %v251
  %268 = vst [vmem:[#allocation2 + $0x58] sm:$0xff] %v252
  %269 = vst [vmem:[#allocation2 + $0x60] sm:$0xff] %v253
  %270 = vst [vmem:[#allocation2 + $0x68] sm:$0xff] %v254
  %271 = vst [vmem:[#allocation2 + $0x70] sm:$0xff] %v255
  %272 = vst [vmem:[#allocation2 + $0x78] sm:$0xff] %v256
  // Predicated region
  $region34: #{graphsage_forward.3} parent=0 // pred_check
    %p273 = pneg %p28
  $region35: #{graphsage_forward.3} parent=0 // pred_check_branch
    %275 = sbr.rel (%p273) target = $region37
  $region36: #{graphsage_forward.3} parent=0 // pred_region
    %v276 = vld [vmem:[#allocation2] sm:$0xff]
    %v277 = vld [vmem:[#allocation2 + $0x8] sm:$0xff]
    %v278 = vld [vmem:[#allocation2 + $0x10] sm:$0xff]
    %v279 = vld [vmem:[#allocation2 + $0x18] sm:$0xff]
    %v280 = vld [vmem:[#allocation2 + $0x20] sm:$0xff]
    %v281 = vld [vmem:[#allocation2 + $0x28] sm:$0xff]
    %v282 = vld [vmem:[#allocation2 + $0x30] sm:$0xff]
    %v283 = vld [vmem:[#allocation2 + $0x38] sm:$0xff]
    %v284 = vld [vmem:[#allocation2 + $0x40] sm:$0xff]
    %v285 = vld [vmem:[#allocation2 + $0x48] sm:$0xff]
    %v286 = vld [vmem:[#allocation2 + $0x50] sm:$0xff]
    %v287 = vld [vmem:[#allocation2 + $0x58] sm:$0xff]
    %v288 = vld [vmem:[#allocation2 + $0x60] sm:$0xff]
    %v289 = vld [vmem:[#allocation2 + $0x68] sm:$0xff]
    %v290 = vld [vmem:[#allocation2 + $0x70] sm:$0xff]
    %v291 = vld [vmem:[#allocation2 + $0x78] sm:$0xff]
    %v292 = vpack.c.bf16 %v276, %v276
    %v293 = vpack.c.bf16 %v277, %v277
    %v294 = vpack.c.bf16 %v278, %v278
    %v295 = vpack.c.bf16 %v279, %v279
    %v296 = vpack.c.bf16 %v280, %v280
    %v297 = vpack.c.bf16 %v281, %v281
    %v298 = vpack.c.bf16 %v282, %v282
    %v299 = vpack.c.bf16 %v283, %v283
    %v300 = vpack.c.bf16 %v284, %v284
    %v301 = vpack.c.bf16 %v285, %v285
    %v302 = vpack.c.bf16 %v286, %v286
    %v303 = vpack.c.bf16 %v287, %v287
    %v304 = vpack.c.bf16 %v288, %v288
    %v305 = vpack.c.bf16 %v289, %v289
    %v306 = vpack.c.bf16 %v290, %v290
    %v307 = vpack.c.bf16 %v291, %v291
    %v308 = vld [vmem:[%s2] sm:$0xf]
    %v309 = vld [vmem:[%s2 + $0x4] sm:$0xf]
    %v310 = vld [vmem:[%s2 + $0x8] sm:$0xf]
    %v311 = vld [vmem:[%s2 + $0xc] sm:$0xf]
    %v312 = vld [vmem:[%s2 + $0x10] sm:$0xf]
    %v313 = vld [vmem:[%s2 + $0x14] sm:$0xf]
    %v314 = vld [vmem:[%s2 + $0x18] sm:$0xf]
    %v315 = vld [vmem:[%s2 + $0x1c] sm:$0xf]
    %v316 = vld [vmem:[%s2 + $0x20] sm:$0xf]
    %v317 = vld [vmem:[%s2 + $0x24] sm:$0xf]
    %v318 = vld [vmem:[%s2 + $0x28] sm:$0xf]
    %v319 = vld [vmem:[%s2 + $0x2c] sm:$0xf]
    %v320 = vld [vmem:[%s2 + $0x30] sm:$0xf]
    %v321 = vld [vmem:[%s2 + $0x34] sm:$0xf]
    %v322 = vld [vmem:[%s2 + $0x38] sm:$0xf]
    %v323 = vld [vmem:[%s2 + $0x3c] sm:$0xf]
    %v340 = vunpack.c.l.b16 %v292
    %v341 = vunpack.c.l.b16 %v293
    %v342 = vunpack.c.l.b16 %v294
    %v343 = vunpack.c.l.b16 %v295
    %v344 = vunpack.c.l.b16 %v296
    %v345 = vunpack.c.l.b16 %v297
    %v346 = vunpack.c.l.b16 %v298
    %v347 = vunpack.c.l.b16 %v299
    %v348 = vunpack.c.l.b16 %v300
    %v349 = vunpack.c.l.b16 %v301
    %v350 = vunpack.c.l.b16 %v302
    %v351 = vunpack.c.l.b16 %v303
    %v352 = vunpack.c.l.b16 %v304
    %v353 = vunpack.c.l.b16 %v305
    %v354 = vunpack.c.l.b16 %v306
    %v355 = vunpack.c.l.b16 %v307
    %v356 = vpack.c.b16 %v341, %v340
    %v357 = vpack.c.b16 %v343, %v342
    %v358 = vpack.c.b16 %v345, %v344
    %v359 = vpack.c.b16 %v347, %v346
    %v360 = vpack.c.b16 %v349, %v348
    %v361 = vpack.c.b16 %v351, %v350
    %v362 = vpack.c.b16 %v353, %v352
    %v363 = vpack.c.b16 %v355, %v354
    %v388 = vunpack.c.l.b16 %v308
    %v389 = vunpack.c.l.b16 %v309
    %v390 = vunpack.c.l.b16 %v310
    %v391 = vunpack.c.l.b16 %v311
    %v392 = vunpack.c.l.b16 %v312
    %v393 = vunpack.c.l.b16 %v313
    %v394 = vunpack.c.l.b16 %v314
    %v395 = vunpack.c.l.b16 %v315
    %v396 = vunpack.c.l.b16 %v316
    %v397 = vunpack.c.l.b16 %v317
    %v398 = vunpack.c.l.b16 %v318
    %v399 = vunpack.c.l.b16 %v319
    %v400 = vunpack.c.l.b16 %v320
    %v401 = vunpack.c.l.b16 %v321
    %v402 = vunpack.c.l.b16 %v322
    %v403 = vunpack.c.l.b16 %v323
    %v404 = vpack.c.b16 %v389, %v388
    %v405 = vpack.c.b16 %v391, %v390
    %v406 = vpack.c.b16 %v393, %v392
    %v407 = vpack.c.b16 %v395, %v394
    %v408 = vpack.c.b16 %v397, %v396
    %v409 = vpack.c.b16 %v399, %v398
    %v410 = vpack.c.b16 %v401, %v400
    %v411 = vpack.c.b16 %v403, %v402
    %v420 = vld [vmem:[%s3] sm:$0xf]
    %v421 = vld [vmem:[%s3 + $0x4] sm:$0xf]
    %v422 = vld [vmem:[%s3 + $0x8] sm:$0xf]
    %v423 = vld [vmem:[%s3 + $0xc] sm:$0xf]
    %v424 = vld [vmem:[%s3 + $0x10] sm:$0xf]
    %v425 = vld [vmem:[%s3 + $0x14] sm:$0xf]
    %v426 = vld [vmem:[%s3 + $0x18] sm:$0xf]
    %v427 = vld [vmem:[%s3 + $0x1c] sm:$0xf]
    %v428 = vld [vmem:[%s3 + $0x20] sm:$0xf]
    %v429 = vld [vmem:[%s3 + $0x24] sm:$0xf]
    %v430 = vld [vmem:[%s3 + $0x28] sm:$0xf]
    %v431 = vld [vmem:[%s3 + $0x2c] sm:$0xf]
    %v432 = vld [vmem:[%s3 + $0x30] sm:$0xf]
    %v433 = vld [vmem:[%s3 + $0x34] sm:$0xf]
    %v434 = vld [vmem:[%s3 + $0x38] sm:$0xf]
    %v435 = vld [vmem:[%s3 + $0x3c] sm:$0xf]
    %v436 = vld [vmem:[%s3 + $0x40] sm:$0xf]
    %v437 = vld [vmem:[%s3 + $0x44] sm:$0xf]
    %v438 = vld [vmem:[%s3 + $0x48] sm:$0xf]
    %v439 = vld [vmem:[%s3 + $0x4c] sm:$0xf]
    %v440 = vld [vmem:[%s3 + $0x50] sm:$0xf]
    %v441 = vld [vmem:[%s3 + $0x54] sm:$0xf]
    %v442 = vld [vmem:[%s3 + $0x58] sm:$0xf]
    %v443 = vld [vmem:[%s3 + $0x5c] sm:$0xf]
    %v444 = vld [vmem:[%s3 + $0x60] sm:$0xf]
    %v445 = vld [vmem:[%s3 + $0x64] sm:$0xf]
    %v446 = vld [vmem:[%s3 + $0x68] sm:$0xf]
    %v447 = vld [vmem:[%s3 + $0x6c] sm:$0xf]
    %v448 = vld [vmem:[%s3 + $0x70] sm:$0xf]
    %v449 = vld [vmem:[%s3 + $0x74] sm:$0xf]
    %v450 = vld [vmem:[%s3 + $0x78] sm:$0xf]
    %v451 = vld [vmem:[%s3 + $0x7c] sm:$0xf]
    %v452 = vld [vmem:[%s4] sm:$0x1]
    %v454 = vperm.slane %v452, 0
    %v488 = vunpack.c.l.b16 %v420
    %v489 = vunpack.c.l.b16 %v421
    %v490 = vunpack.c.l.b16 %v422
    %v491 = vunpack.c.l.b16 %v423
    %v492 = vunpack.c.l.b16 %v424
    %v493 = vunpack.c.l.b16 %v425
    %v494 = vunpack.c.l.b16 %v426
    %v495 = vunpack.c.l.b16 %v427
    %v496 = vunpack.c.l.b16 %v428
    %v497 = vunpack.c.l.b16 %v429
    %v498 = vunpack.c.l.b16 %v430
    %v499 = vunpack.c.l.b16 %v431
    %v500 = vunpack.c.l.b16 %v432
    %v501 = vunpack.c.l.b16 %v433
    %v502 = vunpack.c.l.b16 %v434
    %v503 = vunpack.c.l.b16 %v435
    %v504 = vunpack.c.l.b16 %v436
    %v505 = vunpack.c.l.b16 %v437
    %v506 = vunpack.c.l.b16 %v438
    %v507 = vunpack.c.l.b16 %v439
    %v508 = vunpack.c.l.b16 %v440
    %v509 = vunpack.c.l.b16 %v441
    %v510 = vunpack.c.l.b16 %v442
    %v511 = vunpack.c.l.b16 %v443
    %v512 = vunpack.c.l.b16 %v444
    %v513 = vunpack.c.l.b16 %v445
    %v514 = vunpack.c.l.b16 %v446
    %v515 = vunpack.c.l.b16 %v447
    %v516 = vunpack.c.l.b16 %v448
    %v517 = vunpack.c.l.b16 %v449
    %v518 = vunpack.c.l.b16 %v450
    %v519 = vunpack.c.l.b16 %v451
    %v520 = vpack.c.b16 %v489, %v488
    %v521 = vpack.c.b16 %v491, %v490
    %v522 = vpack.c.b16 %v493, %v492
    %v523 = vpack.c.b16 %v495, %v494
    %v524 = vpack.c.b16 %v497, %v496
    %v525 = vpack.c.b16 %v499, %v498
    %v526 = vpack.c.b16 %v501, %v500
    %v527 = vpack.c.b16 %v503, %v502
    %v528 = vpack.c.b16 %v505, %v504
    %v529 = vpack.c.b16 %v507, %v506
    %v530 = vpack.c.b16 %v509, %v508
    %v531 = vpack.c.b16 %v511, %v510
    %v532 = vpack.c.b16 %v513, %v512
    %v533 = vpack.c.b16 %v515, %v514
    %v534 = vpack.c.b16 %v517, %v516
    %v535 = vpack.c.b16 %v519, %v518
    %552 = vmatpush.bf16.msra.mxu0 %v527
    %553 = vmatpush.bf16.msra.mxu0 %v526
    %554 = vmatpush.bf16.msra.mxu0 %v525
    %555 = vmatpush.bf16.msra.mxu0 %v524
    %556 = vmatpush.bf16.msra.mxu0 %v523
    %557 = vmatpush.bf16.msra.mxu0 %v522
    %558 = vmatpush.bf16.msra.mxu0 %v521
    %559 = vmatpush.bf16.msra.mxu0 %v520
    %560 = vmatmul.bf16.gmra.mxu0 %v356
    %v561 = vpop.f32.mrf.mxu0
    %v562 = vadd.f32 %v454, %v561
    %v563 = vpop.f32.mrf.mxu0
    %v564 = vadd.f32 %v454, %v563
    %565 = vmatmul.bf16.gmra.mxu0 %v357
    %v566 = vpop.f32.mrf.mxu0
    %v567 = vadd.f32 %v454, %v566
    %v568 = vpop.f32.mrf.mxu0
    %v569 = vadd.f32 %v454, %v568
    %570 = vmatmul.bf16.gmra.mxu0 %v358
    %v571 = vpop.f32.mrf.mxu0
    %v572 = vadd.f32 %v454, %v571
    %v573 = vpop.f32.mrf.mxu0
    %v574 = vadd.f32 %v454, %v573
    %575 = vmatmul.bf16.gmra.mxu0 %v359
    %v576 = vpop.f32.mrf.mxu0
    %v577 = vadd.f32 %v454, %v576
    %v578 = vpop.f32.mrf.mxu0
    %v579 = vadd.f32 %v454, %v578
    %580 = vmatmul.bf16.gmra.mxu0 %v360
    %v581 = vpop.f32.mrf.mxu0
    %v582 = vadd.f32 %v454, %v581
    %v583 = vpop.f32.mrf.mxu0
    %v584 = vadd.f32 %v454, %v583
    %585 = vmatmul.bf16.gmra.mxu0 %v361
    %v586 = vpop.f32.mrf.mxu0
    %v587 = vadd.f32 %v454, %v586
    %v588 = vpop.f32.mrf.mxu0
    %v589 = vadd.f32 %v454, %v588
    %590 = vmatmul.bf16.gmra.mxu0 %v362
    %v591 = vpop.f32.mrf.mxu0
    %v592 = vadd.f32 %v454, %v591
    %v593 = vpop.f32.mrf.mxu0
    %v594 = vadd.f32 %v454, %v593
    %595 = vmatmul.bf16.gmra.mxu0 %v363
    %v596 = vpop.f32.mrf.mxu0
    %v597 = vadd.f32 %v454, %v596
    %v598 = vpop.f32.mrf.mxu0
    %v599 = vadd.f32 %v454, %v598
    %600 = vdwg.mxu0
    %601 = vmatpush.bf16.msra.mxu0 %v535
    %602 = vmatpush.bf16.msra.mxu0 %v534
    %603 = vmatpush.bf16.msra.mxu0 %v533
    %604 = vmatpush.bf16.msra.mxu0 %v532
    %605 = vmatpush.bf16.msra.mxu0 %v531
    %606 = vmatpush.bf16.msra.mxu0 %v530
    %607 = vmatpush.bf16.msra.mxu0 %v529
    %608 = vmatpush.bf16.msra.mxu0 %v528
    %609 = vmatmul.bf16.gmra.mxu0 %v404
    %v610 = vpop.f32.mrf.mxu0
    %v611 = vadd.f32 %v562, %v610
    %v612 = vpop.f32.mrf.mxu0
    %v613 = vadd.f32 %v564, %v612
    %614 = vmatmul.bf16.gmra.mxu0 %v405
    %v615 = vpop.f32.mrf.mxu0
    %v616 = vadd.f32 %v567, %v615
    %v617 = vpop.f32.mrf.mxu0
    %v618 = vadd.f32 %v569, %v617
    %619 = vmatmul.bf16.gmra.mxu0 %v406
    %v620 = vpop.f32.mrf.mxu0
    %v621 = vadd.f32 %v572, %v620
    %v622 = vpop.f32.mrf.mxu0
    %v623 = vadd.f32 %v574, %v622
    %624 = vmatmul.bf16.gmra.mxu0 %v407
    %v625 = vpop.f32.mrf.mxu0
    %v626 = vadd.f32 %v577, %v625
    %v627 = vpop.f32.mrf.mxu0
    %v628 = vadd.f32 %v579, %v627
    %629 = vmatmul.bf16.gmra.mxu0 %v408
    %v630 = vpop.f32.mrf.mxu0
    %v631 = vadd.f32 %v582, %v630
    %v632 = vpop.f32.mrf.mxu0
    %v633 = vadd.f32 %v584, %v632
    %634 = vmatmul.bf16.gmra.mxu0 %v409
    %v635 = vpop.f32.mrf.mxu0
    %v636 = vadd.f32 %v587, %v635
    %v637 = vpop.f32.mrf.mxu0
    %v638 = vadd.f32 %v589, %v637
    %639 = vmatmul.bf16.gmra.mxu0 %v410
    %v640 = vpop.f32.mrf.mxu0
    %v641 = vadd.f32 %v592, %v640
    %v642 = vpop.f32.mrf.mxu0
    %v643 = vadd.f32 %v594, %v642
    %644 = vmatmul.bf16.gmra.mxu0 %v411
    %v645 = vpop.f32.mrf.mxu0
    %v646 = vadd.f32 %v597, %v645
    %v647 = vpop.f32.mrf.mxu0
    %v648 = vadd.f32 %v599, %v647
    %649 = vdwg.mxu0
    %650 = vst [vmem:[%s7] sm:$0xff] %v611
    %651 = vst [vmem:[%s7 + $0x8] sm:$0xff] %v613
    %652 = vst [vmem:[%s7 + $0x10] sm:$0xff] %v616
    %653 = vst [vmem:[%s7 + $0x18] sm:$0xff] %v618
    %654 = vst [vmem:[%s7 + $0x20] sm:$0xff] %v621
    %655 = vst [vmem:[%s7 + $0x28] sm:$0xff] %v623
    %656 = vst [vmem:[%s7 + $0x30] sm:$0xff] %v626
    %657 = vst [vmem:[%s7 + $0x38] sm:$0xff] %v628
    %658 = vst [vmem:[%s7 + $0x40] sm:$0xff] %v631
    %659 = vst [vmem:[%s7 + $0x48] sm:$0xff] %v633
    %660 = vst [vmem:[%s7 + $0x50] sm:$0xff] %v636
    %661 = vst [vmem:[%s7 + $0x58] sm:$0xff] %v638
    %662 = vst [vmem:[%s7 + $0x60] sm:$0xff] %v641
    %663 = vst [vmem:[%s7 + $0x68] sm:$0xff] %v643
    %664 = vst [vmem:[%s7 + $0x70] sm:$0xff] %v646
    %665 = vst [vmem:[%s7 + $0x78] sm:$0xff] %v648
    %v666 = vpack.c.bf16 %v613, %v611
    %v667 = vpack.c.bf16 %v618, %v616
    %v668 = vpack.c.bf16 %v623, %v621
    %v669 = vpack.c.bf16 %v628, %v626
    %v670 = vpack.c.bf16 %v633, %v631
    %v671 = vpack.c.bf16 %v638, %v636
    %v672 = vpack.c.bf16 %v643, %v641
    %v673 = vpack.c.bf16 %v648, %v646
    %v674 = vld [vmem:[%s5] sm:$0xf]
    %v675 = vld [vmem:[%s5 + $0x4] sm:$0xf]
    %v676 = vld [vmem:[%s5 + $0x8] sm:$0xf]
    %v677 = vld [vmem:[%s5 + $0xc] sm:$0xf]
    %v678 = vld [vmem:[%s5 + $0x10] sm:$0xf]
    %v679 = vld [vmem:[%s5 + $0x14] sm:$0xf]
    %v680 = vld [vmem:[%s5 + $0x18] sm:$0xf]
    %v681 = vld [vmem:[%s5 + $0x1c] sm:$0xf]
    %v682 = vld [vmem:[%s5 + $0x20] sm:$0xf]
    %v683 = vld [vmem:[%s5 + $0x24] sm:$0xf]
    %v684 = vld [vmem:[%s5 + $0x28] sm:$0xf]
    %v685 = vld [vmem:[%s5 + $0x2c] sm:$0xf]
    %v686 = vld [vmem:[%s5 + $0x30] sm:$0xf]
    %v687 = vld [vmem:[%s5 + $0x34] sm:$0xf]
    %v688 = vld [vmem:[%s5 + $0x38] sm:$0xf]
    %v689 = vld [vmem:[%s5 + $0x3c] sm:$0xf]
    %v690 = vld [vmem:[%s6] sm:$0x1]
    %v692 = vperm.slane %v690, 0
    %v710 = vunpack.c.l.b16 %v674
    %v711 = vunpack.c.l.b16 %v675
    %v712 = vunpack.c.l.b16 %v676
    %v713 = vunpack.c.l.b16 %v677
    %v714 = vunpack.c.l.b16 %v678
    %v715 = vunpack.c.l.b16 %v679
    %v716 = vunpack.c.l.b16 %v680
    %v717 = vunpack.c.l.b16 %v681
    %v718 = vunpack.c.l.b16 %v682
    %v719 = vunpack.c.l.b16 %v683
    %v720 = vunpack.c.l.b16 %v684
    %v721 = vunpack.c.l.b16 %v685
    %v722 = vunpack.c.l.b16 %v686
    %v723 = vunpack.c.l.b16 %v687
    %v724 = vunpack.c.l.b16 %v688
    %v725 = vunpack.c.l.b16 %v689
    %v726 = vpack.c.b16 %v711, %v710
    %v727 = vpack.c.b16 %v713, %v712
    %v728 = vpack.c.b16 %v715, %v714
    %v729 = vpack.c.b16 %v717, %v716
    %v730 = vpack.c.b16 %v719, %v718
    %v731 = vpack.c.b16 %v721, %v720
    %v732 = vpack.c.b16 %v723, %v722
    %v733 = vpack.c.b16 %v725, %v724
    %742 = vmatpush.bf16.msra.mxu0 %v733
    %743 = vmatpush.bf16.msra.mxu0 %v732
    %744 = vmatpush.bf16.msra.mxu0 %v731
    %745 = vmatpush.bf16.msra.mxu0 %v730
    %746 = vmatpush.bf16.msra.mxu0 %v729
    %747 = vmatpush.bf16.msra.mxu0 %v728
    %748 = vmatpush.bf16.msra.mxu0 %v727
    %749 = vmatpush.bf16.msra.mxu0 %v726
    %750 = vmatmul.bf16.gmra.mxu0 %v666
    %v751 = vpop.f32.mrf.mxu0
    %v752 = vadd.f32 %v692, %v751
    %v753 = vpop.f32.mrf.mxu0
    %v754 = vadd.f32 %v692, %v753
    %755 = vmatmul.bf16.gmra.mxu0 %v667
    %v756 = vpop.f32.mrf.mxu0
    %v757 = vadd.f32 %v692, %v756
    %v758 = vpop.f32.mrf.mxu0
    %v759 = vadd.f32 %v692, %v758
    %760 = vmatmul.bf16.gmra.mxu0 %v668
    %v761 = vpop.f32.mrf.mxu0
    %v762 = vadd.f32 %v692, %v761
    %v763 = vpop.f32.mrf.mxu0
    %v764 = vadd.f32 %v692, %v763
    %765 = vmatmul.bf16.gmra.mxu0 %v669
    %v766 = vpop.f32.mrf.mxu0
    %v767 = vadd.f32 %v692, %v766
    %v768 = vpop.f32.mrf.mxu0
    %v769 = vadd.f32 %v692, %v768
    %770 = vmatmul.bf16.gmra.mxu0 %v670
    %v771 = vpop.f32.mrf.mxu0
    %v772 = vadd.f32 %v692, %v771
    %v773 = vpop.f32.mrf.mxu0
    %v774 = vadd.f32 %v692, %v773
    %775 = vmatmul.bf16.gmra.mxu0 %v671
    %v776 = vpop.f32.mrf.mxu0
    %v777 = vadd.f32 %v692, %v776
    %v778 = vpop.f32.mrf.mxu0
    %v779 = vadd.f32 %v692, %v778
    %780 = vmatmul.bf16.gmra.mxu0 %v672
    %v781 = vpop.f32.mrf.mxu0
    %v782 = vadd.f32 %v692, %v781
    %v783 = vpop.f32.mrf.mxu0
    %v784 = vadd.f32 %v692, %v783
    %785 = vmatmul.bf16.gmra.mxu0 %v673
    %v786 = vpop.f32.mrf.mxu0
    %v787 = vadd.f32 %v692, %v786
    %v788 = vpop.f32.mrf.mxu0
    %v789 = vadd.f32 %v692, %v788
    %790 = vdwg.mxu0
    %791 = vst [vmem:[%s8] sm:$0xff] %v752
    %792 = vst [vmem:[%s8 + $0x8] sm:$0xff] %v754
    %793 = vst [vmem:[%s8 + $0x10] sm:$0xff] %v757
    %794 = vst [vmem:[%s8 + $0x18] sm:$0xff] %v759
    %795 = vst [vmem:[%s8 + $0x20] sm:$0xff] %v762
    %796 = vst [vmem:[%s8 + $0x28] sm:$0xff] %v764
    %797 = vst [vmem:[%s8 + $0x30] sm:$0xff] %v767
    %798 = vst [vmem:[%s8 + $0x38] sm:$0xff] %v769
    %799 = vst [vmem:[%s8 + $0x40] sm:$0xff] %v772
    %800 = vst [vmem:[%s8 + $0x48] sm:$0xff] %v774
    %801 = vst [vmem:[%s8 + $0x50] sm:$0xff] %v777
    %802 = vst [vmem:[%s8 + $0x58] sm:$0xff] %v779
    %803 = vst [vmem:[%s8 + $0x60] sm:$0xff] %v782
    %804 = vst [vmem:[%s8 + $0x68] sm:$0xff] %v784
    %805 = vst [vmem:[%s8 + $0x70] sm:$0xff] %v787
    %806 = vst [vmem:[%s8 + $0x78] sm:$0xff] %v789
  $region37: #{graphsage_forward.3} parent=0 // pred_fallthru
    _
  // Predicated region
  $region38: #{graphsage_forward.3} parent=0 // pred_check
    _
  $region39: #{graphsage_forward.3} parent=0 // pred_check_branch
    %808 = sbr.rel (0) target = $region41
  $region40: #{graphsage_forward.3} parent=0 // pred_region
    _
  $region41: #{graphsage_forward.3} parent=0 // pred_fallthru
    _
  // Predicated region
  $region42: #{graphsage_forward.3} parent=0 // pred_check
    _
  $region43: #{graphsage_forward.3} parent=0 // pred_check_branch
    %810 = sbr.rel (0) target = $region45
  $region44: #{graphsage_forward.3} parent=0 // pred_region
    _
  $region45: #{graphsage_forward.3} parent=0 // pred_fallthru
    _
  // Predicated region
  $region46: #{graphsage_forward.3} parent=0 // pred_check
    _
  $region47: #{graphsage_forward.3} parent=0 // pred_check_branch
    %812 = sbr.rel (0) target = $region49
  $region48: #{graphsage_forward.3} parent=0 // pred_region
    _
  $region49: #{graphsage_forward.3} parent=0 // pred_fallthru
    _
  // Predicated region
  $region50: #{graphsage_forward.3} parent=0 // pred_check
    _
  $region51: #{graphsage_forward.3} parent=0 // pred_check_branch
    %814 = sbr.rel (0) target = $region53
  $region52: #{graphsage_forward.3} parent=0 // pred_region
    _
  $region53: #{graphsage_forward.3} parent=0 // pred_fallthru
    _

</llo_original>
